<compile_context>
chip_gen: v7x
topology: tpu7x:2x2x1
jax: 0.10.0
libtpu: 0.0.40
codegen_flags: <defaults>
</compile_context>

<pallas_src>
import math

import numpy as np
import jax
import jax.numpy as jnp
from jax.experimental import pallas as pl
from jax.experimental.pallas import tpu as pltpu


# ----------------------------------------------------------------------------
# Host-side construction of the per-cutout separable resampling matrices.
# These replicate sinc / lanczos / ramp / reflect-pad conv /
# bicubic(align_corners=True) from the PyTorch `resample` as dense matrices.
# ----------------------------------------------------------------------------
def _sinc(x):
    x = np.asarray(x, dtype=np.float64)
    px = np.pi * x
    out = np.ones_like(x)
    nz = x != 0
    out[nz] = np.sin(px[nz]) / px[nz]
    return out


def _lanczos(x, a):
    cond = np.logical_and(-a < x, x < a)
    out = np.where(cond, _sinc(x) * _sinc(x / a), 0.0)
    return out / out.sum()


def _ramp(ratio, width):
    n = math.ceil(width / ratio + 1)
    out = np.empty((n,), dtype=np.float64)
    cur = 0.0
    for i in range(n):
        out[i] = cur
        cur += ratio
    return np.concatenate([-out[1:][::-1], out])[1:-1]


def _lanczos_matrix(h, dh):
    """(h, h): reflect-pad + valid conv with lanczos(ramp(dh/h, 2), 2) (if dh < h)."""
    if dh >= h:
        return np.eye(h, dtype=np.float64)
    k = _lanczos(_ramp(dh / h, 2), 2)
    pad = (k.shape[0] - 1) // 2
    mat = np.zeros((h, h), dtype=np.float64)
    for i in range(h):
        for j in range(k.shape[0]):
            p = i + j - pad
            if p < 0:
                p = -p                      # reflect (no edge repeat)
            elif p >= h:
                p = 2 * (h - 1) - p
            mat[i, p] += k[j]
    return mat


def _cubic1(x, a):
    return ((a + 2) * x - (a + 3)) * x * x + 1


def _cubic2(x, a):
    return ((a * x - 5 * a) * x + 8 * a) * x - 4 * a


def _bicubic_matrix(dh, h):
    """(dh, h): F.interpolate(mode='bicubic', align_corners=True) along one axis."""
    a = -0.75
    mat = np.zeros((dh, h), dtype=np.float64)
    scale = (h - 1) / (dh - 1) if dh > 1 else 0.0
    for i in range(dh):
        real = i * scale
        in_i = int(np.floor(real))
        t = real - in_i
        w = [_cubic2(t + 1, a), _cubic1(t, a), _cubic1(1 - t, a), _cubic2(2 - t, a)]
        for kk in range(4):
            idx = min(max(in_i - 1 + kk, 0), h - 1)
            mat[i, idx] += w[kk]
    return mat


def _resample_matrix(src, dst):
    """(dst, src): lanczos anti-alias (only when downsizing) followed by bicubic."""
    return _bicubic_matrix(dst, src) @ _lanczos_matrix(src, dst)


def _build_cutout_weights(cut_size, cutn, h_in, w_in, seed):
    """Per-cutout Wy (cs, h_in) / Wx (cs, w_in) acting on the *unpadded* image.

    Folds T.Pad(h_in // 4, fill=0), the random crop (or the `input.clone()`
    branch for ch > cutn - cutn//4) and the lanczos+bicubic resample into one
    matrix per axis; columns that land on the zero padding are dropped.
    """
    pad = h_in // 4                       # T.Pad(input.shape[2] // 4, fill=0)
    side_y, side_x = h_in + 2 * pad, w_in + 2 * pad
    max_size = min(side_x, side_y)
    lower = float(cut_size) / float(max_size)

    rng = np.random.default_rng(seed)
    # batched host-side draws (no per-cutout device round trips); matches the
    # torch path distributionally, not bit-wise (different generators).
    rand_sizes = np.clip(rng.normal(0.8, 0.3, size=(cutn,)), lower, 1.0)
    rand_offs = rng.random(size=(cutn, 2))

    wy = np.zeros((cutn, cut_size, h_in), dtype=np.float32)
    wx = np.zeros((cutn, cut_size, w_in), dtype=np.float32)
    for ii in range(cutn):
        if ii > cutn - cutn // 4:
            # `cutout = input.clone()` branch: resample the full padded image
            wy_pad = _resample_matrix(side_y, cut_size)            # (cs, side_y)
            wx_pad = _resample_matrix(side_x, cut_size)            # (cs, side_x)
        else:
            size = int(max_size * float(rand_sizes[ii]))
            offsetx = min(int(rand_offs[ii, 0] * (side_x - size + 1)), side_x - size)
            offsety = min(int(rand_offs[ii, 1] * (side_y - size + 1)), side_y - size)
            a = _resample_matrix(size, cut_size)                   # (cs, size)
            wy_pad = np.zeros((cut_size, side_y), dtype=np.float64)
            wx_pad = np.zeros((cut_size, side_x), dtype=np.float64)
            wy_pad[:, offsety:offsety + size] = a
            wx_pad[:, offsetx:offsetx + size] = a
        # drop the columns that hit the zero padding (they contribute nothing)
        wy[ii] = wy_pad[:, pad:pad + h_in].astype(np.float32)
        wx[ii] = wx_pad[:, pad:pad + w_in].astype(np.float32)
    return wy, wx


# ----------------------------------------------------------------------------
# Pallas kernel: per (batch, cutout-group) program do G separable contractions.
# ----------------------------------------------------------------------------
def _cutout_kernel(img_ref, wy_ref, wxt_ref, out_ref):
    img = img_ref[0]                      # (C, H, W) bf16; resident across inner grid axis
    c, h, w = img.shape
    img2d = img.reshape(c * h, w)         # free: merges leading (non-lane) dims
    g_per_step = wy_ref.shape[0]          # static
    for g in range(g_per_step):           # static unroll; amortizes per-step overhead
        # (1) W-contraction as ONE big MXU matmul, no in-kernel transpose:
        #     t1[(c,h), x] = sum_w img[(c,h), w] * wxt[w, x]
        t1 = jnp.dot(img2d, wxt_ref[g], preferred_element_type=jnp.float32)   # (C*H, cs) f32
        t1 = t1.reshape(c, h, -1).astype(jnp.bfloat16)                        # free split of lead dim
        # (2) H-contraction; natural dot_general output order is (y, c, x), so no
        #     transpose is emitted.  (bf16 x bf16 -> f32 accumulation.)
        out = jnp.einsum("yh,chx->ycx", wy_ref[g], t1,
                         preferred_element_type=jnp.float32)                  # (cs, C, cs)
        out_ref[g, 0] = out
    # TODO(synk): self.augs (RandomHorizontalFlip / RandomAffine / RandomPerspective
    # / RandomGrayscale + the `x + randn*0.01` lambdas) has no clean Pallas
    # equivalent; it is treated as identity here (skip_augs=True behaviour).


def _pick_group_size(cutn):
    """Largest divisor of cutn (<=8) that still leaves >=2 inner grid steps
    (keeps the cutout axis shardable across v7x's 2 TensorCores)."""
    for g in (8, 4, 2):
        if cutn % g == 0 and cutn // g >= 2:
            return g
    return 1


def make_cutouts_moth(x, *, cut_size, cutn, cut_pow=1.0, seed=0):
    """Forward pass of MakeCutoutsMoth (augs skipped).  x: (N, C, H, W) float32."""
    del cut_pow  # stored by the module but unused in its forward
    n, c, h_in, w_in = x.shape
    wy, wx = _build_cutout_weights(cut_size, cutn, h_in, w_in, seed)
    g = _pick_group_size(cutn)

    # bf16 operands (f32 accumulation in-kernel): halves image HBM/VMEM traffic.
    x_bf16 = x.astype(jnp.bfloat16)
    wy_bf16 = jnp.asarray(wy, dtype=jnp.bfloat16)                              # (cutn, cs, H)
    wxt_bf16 = jnp.asarray(np.transpose(wx, (0, 2, 1)), dtype=jnp.bfloat16)    # (cutn, W, cs)

    # VMEM working-set estimate: double-buffered blocks + f32/bf16 intermediates.
    est = (2 * c * h_in * w_in * 2                      # image block (bf16, x2 buffers)
           + 2 * g * cut_size * h_in * 2                # wy block
           + 2 * g * w_in * cut_size * 2                # wxt block
           + 2 * g * cut_size * c * cut_size * 4        # output block (f32)
           + c * h_in * cut_size * 6                    # t1 in f32 + bf16
           + cut_size * c * cut_size * 4)               # per-cutout result
    vmem_limit = int(min(max(2 * est, 32 << 20), 48 << 20)) if est > (12 << 20) else None

    out = pl.pallas_call(
        _cutout_kernel,
        # output laid out as (cutn, n, y, c, x); the (y,c,x)->(c,y,x) permute is
        # done once in the wrapper (cheaper than an in-kernel relayout).
        out_shape=jax.ShapeDtypeStruct((cutn, n, cut_size, c, cut_size), jnp.float32),
        # batch outermost, cutout-groups innermost: the image block index is
        # constant across the inner axis, so Pallas keeps the image resident in
        # VMEM and only streams the small weight matrices per step.
        grid=(n, cutn // g),
        in_specs=[
            pl.BlockSpec((1, c, h_in, w_in), lambda b, co: (b, 0, 0, 0)),
            pl.BlockSpec((g, cut_size, h_in), lambda b, co: (co, 0, 0)),
            pl.BlockSpec((g, w_in, cut_size), lambda b, co: (co, 0, 0)),
        ],
        out_specs=pl.BlockSpec((g, 1, cut_size, c, cut_size),
                               lambda b, co: (co, b, 0, 0, 0)),
        compiler_params=pltpu.CompilerParams(
            # every (b, cutout-group) writes its own output block -> both axes
            # are independent; lets v7x shard the cutout axis when n == 1.
            dimension_semantics=("parallel", "parallel"),
            vmem_limit_bytes=vmem_limit),
    )(x_bf16, wy_bf16, wxt_bf16)

    # (cutn, n, y, c, x) -> (cutn*n, c, y, x): torch.cat order (cutout-major).
    out = out.reshape(cutn * n, cut_size, c, cut_size)
    return jnp.transpose(out, (0, 2, 1, 3))


if __name__ == "__main__":
    key = jax.random.PRNGKey(0)
    # small shapes consistent with the module: batch=2, channels=4, spatial=16
    x = jax.random.uniform(key, (2, 4, 16, 16), dtype=jnp.float32)
    cut_size, cutn, cut_pow = 8, 8, 1.0   # cutn=8 exercises the full-image branch too

    out = make_cutouts_moth(x, cut_size=cut_size, cutn=cutn, cut_pow=cut_pow, seed=0)
    jax.block_until_ready(out)

    assert out.shape == (cutn * x.shape[0], x.shape[1], cut_size, cut_size)
    assert out.dtype == jnp.float32
    assert bool(jnp.all(jnp.isfinite(out)))

    # f32 reference for the linear pad+crop+resample path (same weight matrices)
    wy_ref, wx_ref = _build_cutout_weights(cut_size, cutn, x.shape[2], x.shape[3], 0)
    ref = jnp.einsum("kyh,nchw,kxw->kncyx",
                     jnp.asarray(wy_ref), x, jnp.asarray(wx_ref))
    ref = ref.reshape(cutn * x.shape[0], x.shape[1], cut_size, cut_size)
    max_err = float(jnp.max(jnp.abs(out - ref)))
    assert max_err < 0.1, f"max abs error vs f32 reference: {max_err}"

    print("KERNEL_OK")
</pallas_src>

<mosaic_0001>
module attributes {stable_mosaic.version = 11 : i64} {
  func.func @_cutout_kernel(%arg0: i32, %arg1: i32, %arg2: memref<1x4x16x16xbf16, #tpu.memory_space<vmem>>, %arg3: memref<4x8x16xbf16, #tpu.memory_space<vmem>>, %arg4: memref<4x16x8xbf16, #tpu.memory_space<vmem>>, %arg5: memref<4x1x8x4x8xf32, #tpu.memory_space<vmem>>) attributes {dimension_semantics = [#tpu.dimension_semantics<parallel>, #tpu.dimension_semantics<parallel>], iteration_bounds = array<i64: 2, 2>, scalar_prefetch = 0 : i64, scratch_operands = 0 : i64, tpu.core_type = #tpu.core_type<tc>, window_params = [{transform_indices = @transform_0, window_bounds = array<i64: 1, 4, 16, 16>}, {transform_indices = @transform_1, window_bounds = array<i64: 4, 8, 16>}, {transform_indices = @transform_2, window_bounds = array<i64: 4, 16, 8>}, {transform_indices = @transform_3, window_bounds = array<i64: 4, 1, 8, 4, 8>}]} {
    %c0 = arith.constant 0 : index
    %c0_0 = arith.constant 0 : index
    %c0_1 = arith.constant 0 : index
    %c0_2 = arith.constant 0 : index
    %0 = vector.load %arg2[%c0, %c0_0, %c0_1, %c0_2] : memref<1x4x16x16xbf16, #tpu.memory_space<vmem>>, vector<1x4x16x16xbf16>
    %1 = vector.shape_cast %0 : vector<1x4x16x16xbf16> to vector<4x16x16xbf16>
    %2 = vector.shape_cast %1 : vector<4x16x16xbf16> to vector<64x16xbf16>
    %c0_3 = arith.constant 0 : index
    %c0_4 = arith.constant 0 : index
    %c0_5 = arith.constant 0 : index
    %3 = vector.load %arg4[%c0_3, %c0_4, %c0_5] : memref<4x16x8xbf16, #tpu.memory_space<vmem>>, vector<1x16x8xbf16>
    %4 = vector.shape_cast %3 : vector<1x16x8xbf16> to vector<16x8xbf16>
    %cst = arith.constant dense<0.000000e+00> : vector<64x8xf32>
    %5 = tpu.matmul %2, %4, %cst {dimension_numbers = #tpu.dot_dimension_numbers<[1], [0], [0], [1], [0, 0, 1, 1], [], []>} : vector<64x16xbf16>, vector<16x8xbf16>, vector<64x8xf32> -> vector<64x8xf32>
    %6 = vector.shape_cast %5 : vector<64x8xf32> to vector<4x16x8xf32>
    %7 = arith.truncf %6 : vector<4x16x8xf32> to vector<4x16x8xbf16>
    %c0_6 = arith.constant 0 : index
    %c0_7 = arith.constant 0 : index
    %c0_8 = arith.constant 0 : index
    %8 = vector.load %arg3[%c0_6, %c0_7, %c0_8] : memref<4x8x16xbf16, #tpu.memory_space<vmem>>, vector<1x8x16xbf16>
    %9 = vector.shape_cast %8 : vector<1x8x16xbf16> to vector<8x16xbf16>
    "tpu.trace_start"() <{level = 10 : i32, message = "yh,chx->ycx"}> : () -> ()
    %cst_9 = arith.constant dense<0.000000e+00> : vector<8x4x8xf32>
    %10 = tpu.matmul %9, %7, %cst_9 {dimension_numbers = #tpu.dot_dimension_numbers<[1], [1], [0], [0, 2], [0, 0, 1, 0, 1, 2], [], []>} : vector<8x16xbf16>, vector<4x16x8xbf16>, vector<8x4x8xf32> -> vector<8x4x8xf32>
    "tpu.trace_stop"() : () -> ()
    %c0_10 = arith.constant 0 : index
    %c0_11 = arith.constant 0 : index
    %c0_12 = arith.constant 0 : index
    %c0_13 = arith.constant 0 : index
    %c0_14 = arith.constant 0 : index
    %11 = vector.load %arg5[%c0_10, %c0_11, %c0_12, %c0_13, %c0_14] : memref<4x1x8x4x8xf32, #tpu.memory_space<vmem>>, vector<1x1x8x4x8xf32>
    %12 = vector.shape_cast %11 : vector<1x1x8x4x8xf32> to vector<8x4x8xf32>
    %13 = vector.shape_cast %10 : vector<8x4x8xf32> to vector<1x1x8x4x8xf32>
    tpu.vector_store %arg5[%c0_10, %c0_11, %c0_12, %c0_13, %c0_14], %13 {strides = array<i32>} : memref<4x1x8x4x8xf32, #tpu.memory_space<vmem>>, vector<1x1x8x4x8xf32>,
    %c1 = arith.constant 1 : index
    %c0_15 = arith.constant 0 : index
    %c0_16 = arith.constant 0 : index
    %14 = vector.load %arg4[%c1, %c0_15, %c0_16] : memref<4x16x8xbf16, #tpu.memory_space<vmem>>, vector<1x16x8xbf16>
    %15 = vector.shape_cast %14 : vector<1x16x8xbf16> to vector<16x8xbf16>
    %cst_17 = arith.constant dense<0.000000e+00> : vector<64x8xf32>
    %16 = tpu.matmul %2, %15, %cst_17 {dimension_numbers = #tpu.dot_dimension_numbers<[1], [0], [0], [1], [0, 0, 1, 1], [], []>} : vector<64x16xbf16>, vector<16x8xbf16>, vector<64x8xf32> -> vector<64x8xf32>
    %17 = vector.shape_cast %16 : vector<64x8xf32> to vector<4x16x8xf32>
    %18 = arith.truncf %17 : vector<4x16x8xf32> to vector<4x16x8xbf16>
    %c1_18 = arith.constant 1 : index
    %c0_19 = arith.constant 0 : index
    %c0_20 = arith.constant 0 : index
    %19 = vector.load %arg3[%c1_18, %c0_19, %c0_20] : memref<4x8x16xbf16, #tpu.memory_space<vmem>>, vector<1x8x16xbf16>
    %20 = vector.shape_cast %19 : vector<1x8x16xbf16> to vector<8x16xbf16>
    "tpu.trace_start"() <{level = 10 : i32, message = "yh,chx->ycx"}> : () -> ()
    %cst_21 = arith.constant dense<0.000000e+00> : vector<8x4x8xf32>
    %21 = tpu.matmul %20, %18, %cst_21 {dimension_numbers = #tpu.dot_dimension_numbers<[1], [1], [0], [0, 2], [0, 0, 1, 0, 1, 2], [], []>} : vector<8x16xbf16>, vector<4x16x8xbf16>, vector<8x4x8xf32> -> vector<8x4x8xf32>
    "tpu.trace_stop"() : () -> ()
    %c1_22 = arith.constant 1 : index
    %c0_23 = arith.constant 0 : index
    %c0_24 = arith.constant 0 : index
    %c0_25 = arith.constant 0 : index
    %c0_26 = arith.constant 0 : index
    %22 = vector.load %arg5[%c1_22, %c0_23, %c0_24, %c0_25, %c0_26] : memref<4x1x8x4x8xf32, #tpu.memory_space<vmem>>, vector<1x1x8x4x8xf32>
    %23 = vector.shape_cast %22 : vector<1x1x8x4x8xf32> to vector<8x4x8xf32>
    %24 = vector.shape_cast %21 : vector<8x4x8xf32> to vector<1x1x8x4x8xf32>
    tpu.vector_store %arg5[%c1_22, %c0_23, %c0_24, %c0_25, %c0_26], %24 {strides = array<i32>} : memref<4x1x8x4x8xf32, #tpu.memory_space<vmem>>, vector<1x1x8x4x8xf32>,
    %c2 = arith.constant 2 : index
    %c0_27 = arith.constant 0 : index
    %c0_28 = arith.constant 0 : index
    %25 = vector.load %arg4[%c2, %c0_27, %c0_28] : memref<4x16x8xbf16, #tpu.memory_space<vmem>>, vector<1x16x8xbf16>
    %26 = vector.shape_cast %25 : vector<1x16x8xbf16> to vector<16x8xbf16>
    %cst_29 = arith.constant dense<0.000000e+00> : vector<64x8xf32>
    %27 = tpu.matmul %2, %26, %cst_29 {dimension_numbers = #tpu.dot_dimension_numbers<[1], [0], [0], [1], [0, 0, 1, 1], [], []>} : vector<64x16xbf16>, vector<16x8xbf16>, vector<64x8xf32> -> vector<64x8xf32>
    %28 = vector.shape_cast %27 : vector<64x8xf32> to vector<4x16x8xf32>
    %29 = arith.truncf %28 : vector<4x16x8xf32> to vector<4x16x8xbf16>
    %c2_30 = arith.constant 2 : index
    %c0_31 = arith.constant 0 : index
    %c0_32 = arith.constant 0 : index
    %30 = vector.load %arg3[%c2_30, %c0_31, %c0_32] : memref<4x8x16xbf16, #tpu.memory_space<vmem>>, vector<1x8x16xbf16>
    %31 = vector.shape_cast %30 : vector<1x8x16xbf16> to vector<8x16xbf16>
    "tpu.trace_start"() <{level = 10 : i32, message = "yh,chx->ycx"}> : () -> ()
    %cst_33 = arith.constant dense<0.000000e+00> : vector<8x4x8xf32>
    %32 = tpu.matmul %31, %29, %cst_33 {dimension_numbers = #tpu.dot_dimension_numbers<[1], [1], [0], [0, 2], [0, 0, 1, 0, 1, 2], [], []>} : vector<8x16xbf16>, vector<4x16x8xbf16>, vector<8x4x8xf32> -> vector<8x4x8xf32>
    "tpu.trace_stop"() : () -> ()
    %c2_34 = arith.constant 2 : index
    %c0_35 = arith.constant 0 : index
    %c0_36 = arith.constant 0 : index
    %c0_37 = arith.constant 0 : index
    %c0_38 = arith.constant 0 : index
    %33 = vector.load %arg5[%c2_34, %c0_35, %c0_36, %c0_37, %c0_38] : memref<4x1x8x4x8xf32, #tpu.memory_space<vmem>>, vector<1x1x8x4x8xf32>
    %34 = vector.shape_cast %33 : vector<1x1x8x4x8xf32> to vector<8x4x8xf32>
    %35 = vector.shape_cast %32 : vector<8x4x8xf32> to vector<1x1x8x4x8xf32>
    tpu.vector_store %arg5[%c2_34, %c0_35, %c0_36, %c0_37, %c0_38], %35 {strides = array<i32>} : memref<4x1x8x4x8xf32, #tpu.memory_space<vmem>>, vector<1x1x8x4x8xf32>,
    %c3 = arith.constant 3 : index
    %c0_39 = arith.constant 0 : index
    %c0_40 = arith.constant 0 : index
    %36 = vector.load %arg4[%c3, %c0_39, %c0_40] : memref<4x16x8xbf16, #tpu.memory_space<vmem>>, vector<1x16x8xbf16>
    %37 = vector.shape_cast %36 : vector<1x16x8xbf16> to vector<16x8xbf16>
    %cst_41 = arith.constant dense<0.000000e+00> : vector<64x8xf32>
    %38 = tpu.matmul %2, %37, %cst_41 {dimension_numbers = #tpu.dot_dimension_numbers<[1], [0], [0], [1], [0, 0, 1, 1], [], []>} : vector<64x16xbf16>, vector<16x8xbf16>, vector<64x8xf32> -> vector<64x8xf32>
    %39 = vector.shape_cast %38 : vector<64x8xf32> to vector<4x16x8xf32>
    %40 = arith.truncf %39 : vector<4x16x8xf32> to vector<4x16x8xbf16>
    %c3_42 = arith.constant 3 : index
    %c0_43 = arith.constant 0 : index
    %c0_44 = arith.constant 0 : index
    %41 = vector.load %arg3[%c3_42, %c0_43, %c0_44] : memref<4x8x16xbf16, #tpu.memory_space<vmem>>, vector<1x8x16xbf16>
    %42 = vector.shape_cast %41 : vector<1x8x16xbf16> to vector<8x16xbf16>
    "tpu.trace_start"() <{level = 10 : i32, message = "yh,chx->ycx"}> : () -> ()
    %cst_45 = arith.constant dense<0.000000e+00> : vector<8x4x8xf32>
    %43 = tpu.matmul %42, %40, %cst_45 {dimension_numbers = #tpu.dot_dimension_numbers<[1], [1], [0], [0, 2], [0, 0, 1, 0, 1, 2], [], []>} : vector<8x16xbf16>, vector<4x16x8xbf16>, vector<8x4x8xf32> -> vector<8x4x8xf32>
    "tpu.trace_stop"() : () -> ()
    %c3_46 = arith.constant 3 : index
    %c0_47 = arith.constant 0 : index
    %c0_48 = arith.constant 0 : index
    %c0_49 = arith.constant 0 : index
    %c0_50 = arith.constant 0 : index
    %44 = vector.load %arg5[%c3_46, %c0_47, %c0_48, %c0_49, %c0_50] : memref<4x1x8x4x8xf32, #tpu.memory_space<vmem>>, vector<1x1x8x4x8xf32>
    %45 = vector.shape_cast %44 : vector<1x1x8x4x8xf32> to vector<8x4x8xf32>
    %46 = vector.shape_cast %43 : vector<8x4x8xf32> to vector<1x1x8x4x8xf32>
    tpu.vector_store %arg5[%c3_46, %c0_47, %c0_48, %c0_49, %c0_50], %46 {strides = array<i32>} : memref<4x1x8x4x8xf32, #tpu.memory_space<vmem>>, vector<1x1x8x4x8xf32>,
    return
  }
  func.func @transform_0(%arg0: i32, %arg1: i32) -> (i32, i32, i32, i32) {
    %c0_i32 = arith.constant 0 : i32
    %c0_i32_0 = arith.constant 0 : i32
    %c0_i32_1 = arith.constant 0 : i32
    %c0_i32_2 = arith.constant 0 : i32
    return %arg0, %c0_i32, %c0_i32_0, %c0_i32_1 : i32, i32, i32, i32
  }
  func.func @transform_1(%arg0: i32, %arg1: i32) -> (i32, i32, i32) {
    %c0_i32 = arith.constant 0 : i32
    %c0_i32_0 = arith.constant 0 : i32
    %c0_i32_1 = arith.constant 0 : i32
    return %arg1, %c0_i32, %c0_i32_0 : i32, i32, i32
  }
  func.func @transform_2(%arg0: i32, %arg1: i32) -> (i32, i32, i32) {
    %c0_i32 = arith.constant 0 : i32
    %c0_i32_0 = arith.constant 0 : i32
    %c0_i32_1 = arith.constant 0 : i32
    return %arg1, %c0_i32, %c0_i32_0 : i32, i32, i32
  }
  func.func @transform_3(%arg0: i32, %arg1: i32) -> (i32, i32, i32, i32, i32) {
    %c0_i32 = arith.constant 0 : i32
    %c0_i32_0 = arith.constant 0 : i32
    %c0_i32_1 = arith.constant 0 : i32
    %c0_i32_2 = arith.constant 0 : i32
    return %arg1, %arg0, %c0_i32, %c0_i32_0, %c0_i32_1 : i32, i32, i32, i32, i32
  }
}

</mosaic_0001>

<llo_original>
// kernel: tpu_custom_call.1
$region0: #{tpu_custom_call.1}
  #allocation0 [shape = 'u32[]', space=smem, size = 0x4, offset = 0x4, fixed_abs, tag = 'smem constant byte address 0x4 - core index']
  #allocation1 [shape = 'u32[144,128]{1,0:T(1,128)}', space=vmem, size = 0x12000, scoped, tag = 'internal scratch']
  #allocation4 [shape = 's32[]', space=sflag, size = 0x4, offset = 0, fixed_abs, tag = 'sflag constant byte address 0x0 - dummy sync flag']
  %s0 = inlined_call_operand.vmem [shape: bf16[2,4,16,16], index: 0, kind: input, shape index: {}]
  %s1 = inlined_call_operand.vmem [shape: bf16[8,8,16], index: 1, kind: input, shape index: {}]
  %s2 = inlined_call_operand.vmem [shape: bf16[8,16,8], index: 2, kind: input, shape index: {}]
  %s3 = inlined_call_operand.hbm [shape: f32[8,2,8,4,8], index: 3, kind: output, shape index: {}]
  %s4 = sld [smem:[#allocation0]]
  $region45: #{tpu_custom_call.1} parent=0
    _
  %s6 = ssub.s32 1, %s4
  %s7 = scalar_select 0, %s6, %s4
  $region1: #{tpu_custom_call.1} parent=0
    #allocation2 [shape = 'u8[131072]{0}', space=vmem, size = 0x20000, scoped, tag = 'output window, operand 0']
    #allocation3 [shape = 's32[2]{0}', space=sflag, size = 0x8, scoped, tag = 'scoped memory for tpu_custom_call.1']
    %8 = vsyncpa [#allocation3], 0
    %s9 = scalar_lea.sflag [#allocation3], 1
    %10 = vsyncpa %s9, 0
    loop: start=0, step=1, limit=6
    $region2: #{tpu_custom_call.1} parent=1 // loop_pre_header
      _
    $region3: #{tpu_custom_call.1} parent=1 // loop_header
      %s12 = sphi 0, %s16
      %p13 = scmp.ge.s32.totalorder %s12, 6
      %s19 = sphi 0, %s31
      %s20 = sphi 0, %s27
      %s21 = sphi 0, %s19
      %s22 = sphi 0, %s20
      %s23 = sphi 0, %s21
      %s24 = sphi 0, %s22
      %s34 = sphi 0, %s36
      %s37 = sphi 0, %s34
      %s38 = sphi 0, %s37
      %s54 = sphi 0, %s38
      %s60 = sphi 0, %s62
      %s63 = sphi 0, %s60
      %s64 = sphi 0, %s63
      %s80 = sphi 0, %s64
      %s86 = sphi 0, %s88
      %s89 = sphi 0, %s86
      %s90 = sphi 0, %s89
      %s106 = sphi 0, %s90
      %s114 = sphi 0, %s116
      %s117 = sphi 0, %s114
      %s118 = sphi 0, %s117
      %s134 = sphi 0, %s118
    $region4: #{tpu_custom_call.1} parent=1 // loop_header_branch
      %15 = sbr.rel (%p13) target = $region8
    $region5: #{tpu_custom_call.1} parent=1 // loop_body
      %s17 = ssub.s32 %s12, 1
      %s18 = ssub.s32 %s12, 2
      %s25 = sadd.s32 1, %s20
      %p26 = scmp.ge.s32.totalorder %s25, 2
      %s27 = scalar_select %p26, 0, %s25
      %s28 = sadd.s32 1, %s19
      %s29 = scalar_select %p26, %s28, %s19
      %p30 = scmp.ge.s32.totalorder %s29, 2
      %s31 = scalar_select %p30, 0, %s29
      %s32 = ssub.s32 %s19, %s31
      %p33 = scmp.eq.s32.totalorder %s32, 0
      %s35 = sadd.s32 %s34, 1
      %s36 = scalar_select %p33, %s34, %s35
      %p39 = pneg %p33
      %p40 = scmp.eq.s32.totalorder %s12, 3
      %p41 = por %p39, %p40
      %p42 = scmp.ne.s32.totalorder %s34, %s37
      %p43 = scmp.eq.s32.totalorder %s12, 0
      %p44 = por %p42, %p43
      %p45 = scmp.ne.s32.totalorder %s34, %s37
      %p46 = scmp.eq.s32.totalorder %s17, 3
      %p47 = por %p45, %p46
      %p48 = scmp.ne.s32.totalorder %s37, %s38
      %p49 = scmp.eq.s32.totalorder %s17, 0
      %p50 = por %p48, %p49
      %p51 = scmp.ne.s32.totalorder %s37, %s38
      %p52 = scmp.eq.s32.totalorder %s18, 3
      %p53 = por %p51, %p52
      %p55 = scmp.ne.s32.totalorder %s38, %s54
      %p56 = scmp.eq.s32.totalorder %s18, 0
      %p57 = por %p55, %p56
      %s58 = ssub.s32 %s20, %s27
      %p59 = scmp.eq.s32.totalorder %s58, 0
      %s61 = sadd.s32 %s60, 1
      %s62 = scalar_select %p59, %s60, %s61
      %p65 = pneg %p59
      %p66 = scmp.eq.s32.totalorder %s12, 3
      %p67 = por %p65, %p66
      %p68 = scmp.ne.s32.totalorder %s60, %s63
      %p69 = scmp.eq.s32.totalorder %s12, 0
      %p70 = por %p68, %p69
      %p71 = scmp.ne.s32.totalorder %s60, %s63
      %p72 = scmp.eq.s32.totalorder %s17, 3
      %p73 = por %p71, %p72
      %p74 = scmp.ne.s32.totalorder %s63, %s64
      %p75 = scmp.eq.s32.totalorder %s17, 0
      %p76 = por %p74, %p75
      %p77 = scmp.ne.s32.totalorder %s63, %s64
      %p78 = scmp.eq.s32.totalorder %s18, 3
      %p79 = por %p77, %p78
      %p81 = scmp.ne.s32.totalorder %s64, %s80
      %p82 = scmp.eq.s32.totalorder %s18, 0
      %p83 = por %p81, %p82
      %s84 = ssub.s32 %s20, %s27
      %p85 = scmp.eq.s32.totalorder %s84, 0
      %s87 = sadd.s32 %s86, 1
      %s88 = scalar_select %p85, %s86, %s87
      %p91 = pneg %p85
      %p92 = scmp.eq.s32.totalorder %s12, 3
      %p93 = por %p91, %p92
      %p94 = scmp.ne.s32.totalorder %s86, %s89
      %p95 = scmp.eq.s32.totalorder %s12, 0
      %p96 = por %p94, %p95
      %p97 = scmp.ne.s32.totalorder %s86, %s89
      %p98 = scmp.eq.s32.totalorder %s17, 3
      %p99 = por %p97, %p98
      %p100 = scmp.ne.s32.totalorder %s89, %s90
      %p101 = scmp.eq.s32.totalorder %s17, 0
      %p102 = por %p100, %p101
      %p103 = scmp.ne.s32.totalorder %s89, %s90
      %p104 = scmp.eq.s32.totalorder %s18, 3
      %p105 = por %p103, %p104
      %p107 = scmp.ne.s32.totalorder %s90, %s106
      %p108 = scmp.eq.s32.totalorder %s18, 0
      %p109 = por %p107, %p108
      %s110 = ssub.s32 %s20, %s27
      %s111 = ssub.s32 %s19, %s31
      %s112 = sor.u32 %s110, %s111
      %p113 = scmp.eq.s32.totalorder %s112, 0
      %s115 = sadd.s32 %s114, 1
      %s116 = scalar_select %p113, %s114, %s115
      %p119 = pneg %p113
      %p120 = scmp.eq.s32.totalorder %s12, 3
      %p121 = por %p119, %p120
      %p122 = scmp.ne.s32.totalorder %s114, %s117
      %p123 = scmp.eq.s32.totalorder %s12, 0
      %p124 = por %p122, %p123
      %p125 = scmp.ne.s32.totalorder %s114, %s117
      %p126 = scmp.eq.s32.totalorder %s17, 3
      %p127 = por %p125, %p126
      %p128 = scmp.ne.s32.totalorder %s117, %s118
      %p129 = scmp.eq.s32.totalorder %s17, 0
      %p130 = por %p128, %p129
      %p131 = scmp.ne.s32.totalorder %s117, %s118
      %p132 = scmp.eq.s32.totalorder %s18, 3
      %p133 = por %p131, %p132
      %p135 = scmp.ne.s32.totalorder %s118, %s134
      %p136 = scmp.eq.s32.totalorder %s18, 0
      %p137 = por %p135, %p136
      %p138 = scmp.le.s32.totalorder 1, %s12
      %p139 = scmp.lt.s32.totalorder %s12, 5
      %p140 = pnand %p138, %p139
      %p141 = pneg %p140
      // Predicated region
      $region9: #{tpu_custom_call.1} parent=5 // pred_check
        _
      $region10: #{tpu_custom_call.1} parent=5 // pred_check_branch
        %143 = sbr.rel (%p140) target = $region12
      $region11: #{tpu_custom_call.1} parent=5 // pred_region
        %s144 = ssub.s32 %s12, 1
      $region12: #{tpu_custom_call.1} parent=5 // pred_fallthru
        _
      %p145 = scmp.lt.s32.totalorder %s12, 4
      // Predicated region
      $region13: #{tpu_custom_call.1} parent=5 // pred_check
        %p146 = pneg %p145
      $region14: #{tpu_custom_call.1} parent=5 // pred_check_branch
        %148 = sbr.rel (%p146) target = $region16
      $region15: #{tpu_custom_call.1} parent=5 // pred_region
        // Predicated region
        $region17: #{tpu_custom_call.1} parent=15 // pred_check
          %p149 = pneg %p44
        $region18: #{tpu_custom_call.1} parent=15 // pred_check_branch
          %151 = sbr.rel (%p149) target = $region20
        $region19: #{tpu_custom_call.1} parent=15 // pred_region
          %p152 = scmp.lt.s32.totalorder %s19, 1
          %s153 = scalar_select %p152, %s19, 1
          %s154 = smul.addr %s153, 8
          %s155 = smul.addr %s154, 4
          %s156 = scalar_lea.vmem %s0, %s155
        $region20: #{tpu_custom_call.1} parent=15 // pred_fallthru
          _
        // Predicated region
        $region21: #{tpu_custom_call.1} parent=15 // pred_check
          %p157 = pneg %p70
        $region22: #{tpu_custom_call.1} parent=15 // pred_check_branch
          %159 = sbr.rel (%p157) target = $region24
        $region23: #{tpu_custom_call.1} parent=15 // pred_region
          %s160 = smul.u32 4, %s20
          %p161 = scmp.lt.s32.totalorder %s160, 7
          %s162 = scalar_select %p161, %s160, 7
          %s163 = smul.addr %s162, 4
          %s164 = scalar_lea.vmem %s1, %s163
          %s165 = smul.u32 4, %s20
        $region24: #{tpu_custom_call.1} parent=15 // pred_fallthru
          _
        // Predicated region
        $region25: #{tpu_custom_call.1} parent=15 // pred_check
          %p166 = pneg %p96
        $region26: #{tpu_custom_call.1} parent=15 // pred_check_branch
          %168 = sbr.rel (%p166) target = $region28
        $region27: #{tpu_custom_call.1} parent=15 // pred_region
          %s169 = smul.u32 4, %s20
          %p170 = scmp.lt.s32.totalorder %s169, 7
          %s171 = scalar_select %p170, %s169, 7
          %s172 = smul.addr %s171, 2
          %s173 = smul.addr %s172, 4
          %s174 = scalar_lea.vmem %s2, %s173
          %s175 = smul.u32 4, %s20
        $region28: #{tpu_custom_call.1} parent=15 // pred_fallthru
          _
      $region16: #{tpu_custom_call.1} parent=5 // pred_fallthru
        _
      %p176 = scmp.le.s32.totalorder 1, %s12
      %p177 = scmp.lt.s32.totalorder %s12, 5
      %p178 = pnand %p176, %p177
      %p179 = pneg %p178
      // Predicated region
      $region29: #{tpu_custom_call.1} parent=5 // pred_check
        _
      $region30: #{tpu_custom_call.1} parent=5 // pred_check_branch
        %181 = sbr.rel (%p178) target = $region32
      $region31: #{tpu_custom_call.1} parent=5 // pred_region
        %s182 = ssub.s32 %s12, 1
        %p183 = scmp.lt.s32.totalorder %s21, 1
        %s184 = scalar_select %p183, %s21, 1
        %s185 = smul.addr %s184, 8
        %s186 = smul.addr %s185, 4
        %s187 = scalar_lea.vmem %s0, %s186
        %p188 = pneg %p50
        %p189 = pneg %p47
        %s190 = smul.u32 4, %s22
        %p191 = scmp.lt.s32.totalorder %s190, 7
        %s192 = scalar_select %p191, %s190, 7
        %s193 = smul.addr %s192, 4
        %s194 = scalar_lea.vmem %s1, %s193
        %p195 = pneg %p76
        %p196 = pneg %p73
        %s197 = smul.u32 4, %s22
        %p198 = scmp.lt.s32.totalorder %s197, 7
        %s199 = scalar_select %p198, %s197, 7
        %s200 = smul.addr %s199, 2
        %s201 = smul.addr %s200, 4
        %s202 = scalar_lea.vmem %s2, %s201
        %p203 = pneg %p102
        %p204 = pneg %p99
        %p205 = pneg %p130
        %p206 = pneg %p127
        %s207 = sand.u32 %s117, 1
        %s208 = scalar_lea.sflag [#allocation3], %s207
        %s209 = sand.u32 %s117, 1
        %s210 = smul.addr %s209, 128
        %s211 = scalar_lea.vmem [#allocation2], %s210
        %p212 = scmp.lt.s32.totalorder %s21, 1
        %s213 = scalar_select %p212, %s21, 1
        %s214 = smul.addr %s213, 8
        %s215 = smul.addr %s214, 4
        %s216 = scalar_lea.vmem %s0, %s215
        %s217 = smul.u32 4, %s22
        %p218 = scmp.lt.s32.totalorder %s217, 7
        %s219 = scalar_select %p218, %s217, 7
        %s220 = smul.addr %s219, 4
        %s221 = scalar_lea.vmem %s1, %s220
        %s222 = smul.u32 4, %s22
        %s223 = smul.u32 4, %s22
        %p224 = scmp.lt.s32.totalorder %s223, 7
        %s225 = scalar_select %p224, %s223, 7
        %s226 = smul.addr %s225, 2
        %s227 = smul.addr %s226, 4
        %s228 = scalar_lea.vmem %s2, %s227
        %s229 = smul.u32 4, %s22
        %s230 = smul.u32 4, %s22
        %v232 = vld [vmem:[%s216] sm:$0xf]
        %v233 = vld [vmem:[%s216 + $0x4] sm:$0xf]
        %v234 = vld [vmem:[%s216 + $0x8] sm:$0xf]
        %v235 = vld [vmem:[%s216 + $0xc] sm:$0xf]
        %v236 = vld [vmem:[%s216 + $0x10] sm:$0xf]
        %v237 = vld [vmem:[%s216 + $0x14] sm:$0xf]
        %v238 = vld [vmem:[%s216 + $0x18] sm:$0xf]
        %v239 = vld [vmem:[%s216 + $0x1c] sm:$0xf]
        %v240 = vld [vmem:[%s228] sm:$0xf]
        %v241 = vld [vmem:[%s228 + $0x4] sm:$0xf]
        %v250 = vunpack.c.l.b16 %v232
        %v251 = vunpack.c.l.b16 %v233
        %v252 = vunpack.c.l.b16 %v234
        %v253 = vunpack.c.l.b16 %v235
        %v254 = vunpack.c.l.b16 %v236
        %v255 = vunpack.c.l.b16 %v237
        %v256 = vunpack.c.l.b16 %v238
        %v257 = vunpack.c.l.b16 %v239
        %v258 = vpack.c.b16 %v251, %v250
        %v259 = vpack.c.b16 %v253, %v252
        %v260 = vpack.c.b16 %v255, %v254
        %v261 = vpack.c.b16 %v257, %v256
        %v264 = vunpack.c.l.b16 %v240
        %v265 = vunpack.c.l.b16 %v241
        %v266 = vpack.c.b16 %v265, %v264
        %vm268 = vcmask 130048
        %v270 = vsel %vm268, %v258, 0
        %v273 = vsel %vm268, %v259, 0
        %v276 = vsel %vm268, %v260, 0
        %v279 = vsel %vm268, %v261, 0
        %281 = vmatprep.subr.bf16.mxu0 0
        %282 = vmatpush1.bf16.msra.mxu0 %v266
        %283 = vmatprep.subr.bf16.mxu0 0
        %284 = vmatpush1.bf16.msra.mxu0 0
        %285 = vmatprep.subr.bf16.mxu0 0
        %286 = vmatpush1.bf16.msra.mxu0 0
        %287 = vmatprep.subr.bf16.mxu0 0
        %288 = vmatpush1.bf16.msra.mxu0 0
        %289 = vmatprep.subr.bf16.mxu0 0
        %290 = vmatpush1.bf16.msra.mxu0 0
        %291 = vmatprep.subr.bf16.mxu0 0
        %292 = vmatpush1.bf16.msra.mxu0 0
        %293 = vmatprep.subr.bf16.mxu0 0
        %294 = vmatpush1.bf16.msra.mxu0 0
        %295 = vmatprep.subr.bf16.mxu0 0
        %296 = vmatpush1.bf16.msra.mxu0 0
        %297 = vmatprep.subr.bf16.mxu0 0
        %298 = vmatpush1.bf16.msra.mxu0 0
        %299 = vmatprep.subr.bf16.mxu0 0
        %300 = vmatpush1.bf16.msra.mxu0 0
        %301 = vmatprep.subr.bf16.mxu0 0
        %302 = vmatpush1.bf16.msra.mxu0 0
        %303 = vmatprep.subr.bf16.mxu0 0
        %304 = vmatpush1.bf16.msra.mxu0 0
        %305 = vmatprep.subr.bf16.mxu0 0
        %306 = vmatpush1.bf16.msra.mxu0 0
        %307 = vmatprep.subr.bf16.mxu0 0
        %308 = vmatpush1.bf16.msra.mxu0 0
        %309 = vmatprep.subr.bf16.mxu0 0
        %310 = vmatpush1.bf16.msra.mxu0 0
        %311 = vmatprep.subr.bf16.mxu0 0
        %312 = vmatpush1.bf16.msra.mxu0 0
        %313 = vmatprep.mubr.bf16.mxu0 0
        %314 = vmatmul.mubr.bf16.gmra.mrb[0].mxu0 %v270
        %v315 = vpop.f32.mrb[0].mxu0
        %v316 = vadd.f32 0.0, %v315
        %v317 = vpop.f32.mrb[0].mxu0
        %v318 = vpop.f32.mrb[0].mxu0
        %v319 = vadd.f32 0.0, %v318
        %v320 = vpop.f32.mrb[0].mxu0
        %321 = vmatprep.mubr.bf16.mxu0 0
        %322 = vmatmul.mubr.bf16.gmra.mrb[0].mxu0 %v273
        %v323 = vpop.f32.mrb[0].mxu0
        %v324 = vadd.f32 0.0, %v323
        %v325 = vpop.f32.mrb[0].mxu0
        %v326 = vpop.f32.mrb[0].mxu0
        %v327 = vadd.f32 0.0, %v326
        %v328 = vpop.f32.mrb[0].mxu0
        %329 = vmatprep.mubr.bf16.mxu0 0
        %330 = vmatmul.mubr.bf16.gmra.mrb[0].mxu0 %v276
        %v331 = vpop.f32.mrb[0].mxu0
        %v332 = vadd.f32 0.0, %v331
        %v333 = vpop.f32.mrb[0].mxu0
        %v334 = vpop.f32.mrb[0].mxu0
        %v335 = vadd.f32 0.0, %v334
        %v336 = vpop.f32.mrb[0].mxu0
        %337 = vmatprep.mubr.bf16.mxu0 0
        %338 = vmatmul.mubr.bf16.gmra.mrb[0].mxu0 %v279
        %v339 = vpop.f32.mrb[0].mxu0
        %v340 = vadd.f32 0.0, %v339
        %v341 = vpop.f32.mrb[0].mxu0
        %v342 = vpop.f32.mrb[0].mxu0
        %v343 = vadd.f32 0.0, %v342
        %v344 = vpop.f32.mrb[0].mxu0
        %345 = vdwg.mxu0
        %v346 = vpack.c.bf16 %v319, %v316
        %v347 = vpack.c.bf16 %v327, %v324
        %v348 = vpack.c.bf16 %v335, %v332
        %v349 = vpack.c.bf16 %v343, %v340
        %v350 = vld [vmem:[%s221] sm:$0xf]
        %v353 = vpack.i.b16 %v347, %v346
        %v355 = vshrl.u32 %v346, 16
        %v356 = vshrl.u32 %v347, 16
        %v357 = vpack.i.b16 %v356, %v355
        %v361 = vpack.i.b16 %v349, %v348
        %v363 = vshrl.u32 %v348, 16
        %v364 = vshrl.u32 %v349, 16
        %v365 = vpack.i.b16 %v364, %v363
        %v368 = vpack.i.b16 0, 0
        %v370 = vshrl.u32 0, 16
        %v371 = vpack.i.b16 %v370, %v370
        %v373 = vcombine.high %v353, %v368
        %v375 = vunpack.c.l.s4 1983009808
        %v376 = vunpack.c.0.s8 %v375
        %v377 = vlaneseq
        %v378 = vshrl.u32 %v377, 7
        %v379 = vsub.s32 %v376, %v378
        %v380 = vrot.slane %v353, %v379
        %v382 = vunpack.c.l.s4 1983009808
        %v383 = vunpack.c.0.s8 %v382
        %v384 = vlaneseq
        %v385 = vshrl.u32 %v384, 7
        %v386 = vsub.s32 %v383, %v385
        %v387 = vrot.slane %v373, %v386
        %v388 = vcombine.high %v361, %v368
        %v390 = vunpack.c.l.s4 1983009808
        %v391 = vunpack.c.0.s8 %v390
        %v392 = vlaneseq
        %v393 = vshrl.u32 %v392, 7
        %v394 = vsub.s32 %v391, %v393
        %v395 = vrot.slane %v361, %v394
        %v397 = vunpack.c.l.s4 1983009808
        %v398 = vunpack.c.0.s8 %v397
        %v399 = vlaneseq
        %v400 = vshrl.u32 %v399, 7
        %v401 = vsub.s32 %v398, %v400
        %v402 = vrot.slane %v388, %v401
        %v403 = vcombine.low %v380, %v395
        %v404 = vcombine.high %v380, %v395
        %v406 = vunpack.c.l.s4 1934713408
        %v407 = vunpack.c.0.s8 %v406
        %v408 = vlaneseq
        %v409 = vshrl.u32 %v408, 7
        %v410 = vsub.s32 %v407, %v409
        %v411 = vrot.slane %v403, %v410
        %v413 = vunpack.c.l.s4 1934713408
        %v414 = vunpack.c.0.s8 %v413
        %v415 = vlaneseq
        %v416 = vshrl.u32 %v415, 7
        %v417 = vsub.s32 %v414, %v416
        %v418 = vrot.slane %v404, %v417
        %v419 = vcombine.low %v387, %v402
        %v420 = vcombine.high %v387, %v402
        %v422 = vunpack.c.l.s4 1934713408
        %v423 = vunpack.c.0.s8 %v422
        %v424 = vlaneseq
        %v425 = vshrl.u32 %v424, 7
        %v426 = vsub.s32 %v423, %v425
        %v427 = vrot.slane %v419, %v426
        %v429 = vunpack.c.l.s4 1934713408
        %v430 = vunpack.c.0.s8 %v429
        %v431 = vlaneseq
        %v432 = vshrl.u32 %v431, 7
        %v433 = vsub.s32 %v430, %v432
        %v434 = vrot.slane %v420, %v433
        %v435 = vcombine.high %v411, 0
        %v436 = vcombine.high %v418, 0
        %v437 = vcombine.high %v427, 0
        %v438 = vcombine.high %v434, 0
        %v439 = vcombine.high %v357, %v371
        %v441 = vunpack.c.l.s4 1983009808
        %v442 = vunpack.c.0.s8 %v441
        %v443 = vlaneseq
        %v444 = vshrl.u32 %v443, 7
        %v445 = vsub.s32 %v442, %v444
        %v446 = vrot.slane %v357, %v445
        %v448 = vunpack.c.l.s4 1983009808
        %v449 = vunpack.c.0.s8 %v448
        %v450 = vlaneseq
        %v451 = vshrl.u32 %v450, 7
        %v452 = vsub.s32 %v449, %v451
        %v453 = vrot.slane %v439, %v452
        %v454 = vcombine.high %v365, %v371
        %v456 = vunpack.c.l.s4 1983009808
        %v457 = vunpack.c.0.s8 %v456
        %v458 = vlaneseq
        %v459 = vshrl.u32 %v458, 7
        %v460 = vsub.s32 %v457, %v459
        %v461 = vrot.slane %v365, %v460
        %v463 = vunpack.c.l.s4 1983009808
        %v464 = vunpack.c.0.s8 %v463
        %v465 = vlaneseq
        %v466 = vshrl.u32 %v465, 7
        %v467 = vsub.s32 %v464, %v466
        %v468 = vrot.slane %v454, %v467
        %v469 = vcombine.low %v446, %v461
        %v470 = vcombine.high %v446, %v461
        %v472 = vunpack.c.l.s4 1934713408
        %v473 = vunpack.c.0.s8 %v472
        %v474 = vlaneseq
        %v475 = vshrl.u32 %v474, 7
        %v476 = vsub.s32 %v473, %v475
        %v477 = vrot.slane %v469, %v476
        %v479 = vunpack.c.l.s4 1934713408
        %v480 = vunpack.c.0.s8 %v479
        %v481 = vlaneseq
        %v482 = vshrl.u32 %v481, 7
        %v483 = vsub.s32 %v480, %v482
        %v484 = vrot.slane %v470, %v483
        %v485 = vcombine.low %v453, %v468
        %v486 = vcombine.high %v453, %v468
        %v488 = vunpack.c.l.s4 1934713408
        %v489 = vunpack.c.0.s8 %v488
        %v490 = vlaneseq
        %v491 = vshrl.u32 %v490, 7
        %v492 = vsub.s32 %v489, %v491
        %v493 = vrot.slane %v485, %v492
        %v495 = vunpack.c.l.s4 1934713408
        %v496 = vunpack.c.0.s8 %v495
        %v497 = vlaneseq
        %v498 = vshrl.u32 %v497, 7
        %v499 = vsub.s32 %v496, %v498
        %v500 = vrot.slane %v486, %v499
        %v501 = vcombine.high %v477, 0
        %v502 = vcombine.high %v484, 0
        %v503 = vcombine.high %v493, 0
        %v504 = vcombine.high %v500, 0
        %v505 = vcombine.low %v411, %v418
        %v507 = vunpack.c.l.s4 1983009808
        %v508 = vunpack.c.0.s8 %v507
        %v509 = vlaneseq
        %v510 = vshrl.u32 %v509, 7
        %v511 = vsub.s32 %v508, %v510
        %v512 = vrot.slane %v505, %v511
        %v513 = vcombine.low %v435, %v436
        %v515 = vunpack.c.l.s4 1983009808
        %v516 = vunpack.c.0.s8 %v515
        %v517 = vlaneseq
        %v518 = vshrl.u32 %v517, 7
        %v519 = vsub.s32 %v516, %v518
        %v520 = vrot.slane %v513, %v519
        %v521 = vcombine.low %v427, %v434
        %v523 = vunpack.c.l.s4 1983009808
        %v524 = vunpack.c.0.s8 %v523
        %v525 = vlaneseq
        %v526 = vshrl.u32 %v525, 7
        %v527 = vsub.s32 %v524, %v526
        %v528 = vrot.slane %v521, %v527
        %v529 = vcombine.low %v437, %v438
        %v531 = vunpack.c.l.s4 1983009808
        %v532 = vunpack.c.0.s8 %v531
        %v533 = vlaneseq
        %v534 = vshrl.u32 %v533, 7
        %v535 = vsub.s32 %v532, %v534
        %v536 = vrot.slane %v529, %v535
        %v537 = vcombine.low %v512, %v520
        %v539 = vunpack.c.l.s4 1934713408
        %v540 = vunpack.c.0.s8 %v539
        %v541 = vlaneseq
        %v542 = vshrl.u32 %v541, 7
        %v543 = vsub.s32 %v540, %v542
        %v544 = vrot.slane %v537, %v543
        %v545 = vcombine.low %v528, %v536
        %v547 = vunpack.c.l.s4 1934713408
        %v548 = vunpack.c.0.s8 %v547
        %v549 = vlaneseq
        %v550 = vshrl.u32 %v549, 7
        %v551 = vsub.s32 %v548, %v550
        %v552 = vrot.slane %v545, %v551
        %v553 = vcombine.low %v544, %v552
        %v554 = vcombine.high %v544, %v552
        %v555 = vcombine.low %v477, %v484
        %v557 = vunpack.c.l.s4 1983009808
        %v558 = vunpack.c.0.s8 %v557
        %v559 = vlaneseq
        %v560 = vshrl.u32 %v559, 7
        %v561 = vsub.s32 %v558, %v560
        %v562 = vrot.slane %v555, %v561
        %v563 = vcombine.low %v501, %v502
        %v565 = vunpack.c.l.s4 1983009808
        %v566 = vunpack.c.0.s8 %v565
        %v567 = vlaneseq
        %v568 = vshrl.u32 %v567, 7
        %v569 = vsub.s32 %v566, %v568
        %v570 = vrot.slane %v563, %v569
        %v571 = vcombine.low %v493, %v500
        %v573 = vunpack.c.l.s4 1983009808
        %v574 = vunpack.c.0.s8 %v573
        %v575 = vlaneseq
        %v576 = vshrl.u32 %v575, 7
        %v577 = vsub.s32 %v574, %v576
        %v578 = vrot.slane %v571, %v577
        %v579 = vcombine.low %v503, %v504
        %v581 = vunpack.c.l.s4 1983009808
        %v582 = vunpack.c.0.s8 %v581
        %v583 = vlaneseq
        %v584 = vshrl.u32 %v583, 7
        %v585 = vsub.s32 %v582, %v584
        %v586 = vrot.slane %v579, %v585
        %v587 = vcombine.low %v562, %v570
        %v589 = vunpack.c.l.s4 1934713408
        %v590 = vunpack.c.0.s8 %v589
        %v591 = vlaneseq
        %v592 = vshrl.u32 %v591, 7
        %v593 = vsub.s32 %v590, %v592
        %v594 = vrot.slane %v587, %v593
        %v595 = vcombine.low %v578, %v586
        %v597 = vunpack.c.l.s4 1934713408
        %v598 = vunpack.c.0.s8 %v597
        %v599 = vlaneseq
        %v600 = vshrl.u32 %v599, 7
        %v601 = vsub.s32 %v598, %v600
        %v602 = vrot.slane %v595, %v601
        %v603 = vcombine.low %v594, %v602
        %v604 = vcombine.high %v594, %v602
        %v607 = vpack.i.b16 %v603, %v553
        %v608 = vshrl.u32 %v553, 16
        %v609 = vshrl.u32 %v603, 16
        %v610 = vpack.i.b16 %v609, %v608
        %v613 = vpack.i.b16 %v604, %v554
        %v614 = vshrl.u32 %v554, 16
        %v615 = vshrl.u32 %v604, 16
        %v616 = vpack.i.b16 %v615, %v614
        %617 = vrot.lane.b32.xlu0 %v610, 8
        %v618 = vpop.permute.xlu0 %617
        %619 = vrot.lane.b32.xlu0 %v613, 16
        %v620 = vpop.permute.xlu0 %619
        %621 = vrot.lane.b32.xlu0 %v616, 24
        %v622 = vpop.permute.xlu0 %621
        %vm623 = vcmask 64512
        %v626 = vsel %vm623, %v607, %v618
        %v628 = vsel %vm268, %v626, %v620
        %vm629 = vcmask 195584
        %v631 = vsel %vm629, %v628, %v622
        %v633 = vcombine.low 0.0, 0.0
        %v635 = vunpack.c.l.s4 1983009808
        %v636 = vunpack.c.0.s8 %v635
        %v637 = vlaneseq
        %v638 = vshrl.u32 %v637, 7
        %v639 = vsub.s32 %v636, %v638
        %v640 = vrot.slane %v633, %v639
        %v641 = vcombine.low %v640, %v640
        %v642 = vcombine.high %v640, %v640
        %v644 = vunpack.c.l.s4 1934713408
        %v645 = vunpack.c.0.s8 %v644
        %v646 = vlaneseq
        %v647 = vshrl.u32 %v646, 7
        %v648 = vsub.s32 %v645, %v647
        %v649 = vrot.slane %v641, %v648
        %v651 = vunpack.c.l.s4 1934713408
        %v652 = vunpack.c.0.s8 %v651
        %v653 = vlaneseq
        %v654 = vshrl.u32 %v653, 7
        %v655 = vsub.s32 %v652, %v654
        %v656 = vrot.slane %v642, %v655
        %v657 = vcombine.low %v649, %v649
        %v658 = vcombine.high %v649, %v649
        %v659 = vcombine.low %v656, %v656
        %v660 = vcombine.high %v656, %v656
        %662 = vrot.lane.b32.xlu0 %v658, 8
        %v663 = vpop.permute.xlu0 %662
        %666 = vrot.lane.b32.xlu0 %v659, 16
        %v667 = vpop.permute.xlu0 %666
        %670 = vrot.lane.b32.xlu0 %v660, 24
        %v671 = vpop.permute.xlu0 %670
        %v673 = vsel %vm623, %v657, %v663
        %v674 = vsel %vm268, %v673, %v667
        %v675 = vsel %vm629, %v674, %v671
        %v677 = vsel %vm268, %v350, 0
        %679 = vmatprep.subr.bf16.mxu0 0
        %680 = vmatpush1.bf16.msra.mxu0 %v631
        %681 = vmatprep.subr.bf16.mxu0 0
        %682 = vmatpush1.bf16.msra.mxu0 0
        %683 = vmatprep.subr.bf16.mxu0 0
        %684 = vmatpush1.bf16.msra.mxu0 0
        %685 = vmatprep.subr.bf16.mxu0 0
        %686 = vmatpush1.bf16.msra.mxu0 0
        %687 = vmatprep.subr.bf16.mxu0 0
        %688 = vmatpush1.bf16.msra.mxu0 0
        %689 = vmatprep.subr.bf16.mxu0 0
        %690 = vmatpush1.bf16.msra.mxu0 0
        %691 = vmatprep.subr.bf16.mxu0 0
        %692 = vmatpush1.bf16.msra.mxu0 0
        %693 = vmatprep.subr.bf16.mxu0 0
        %694 = vmatpush1.bf16.msra.mxu0 0
        %695 = vmatprep.subr.bf16.mxu0 0
        %696 = vmatpush1.bf16.msra.mxu0 0
        %697 = vmatprep.subr.bf16.mxu0 0
        %698 = vmatpush1.bf16.msra.mxu0 0
        %699 = vmatprep.subr.bf16.mxu0 0
        %700 = vmatpush1.bf16.msra.mxu0 0
        %701 = vmatprep.subr.bf16.mxu0 0
        %702 = vmatpush1.bf16.msra.mxu0 0
        %703 = vmatprep.subr.bf16.mxu0 0
        %704 = vmatpush1.bf16.msra.mxu0 0
        %705 = vmatprep.subr.bf16.mxu0 0
        %706 = vmatpush1.bf16.msra.mxu0 0
        %707 = vmatprep.subr.bf16.mxu0 0
        %708 = vmatpush1.bf16.msra.mxu0 0
        %709 = vmatprep.subr.bf16.mxu0 0
        %710 = vmatpush1.bf16.msra.mxu0 0
        %711 = vmatprep.mubr.bf16.mxu0 0
        %712 = vmatmul.mubr.bf16.gmra.mrb[0].mxu0 %v677
        %v713 = vpop.f32.mrb[0].mxu0
        %v714 = vadd.f32 %v675, %v713
        %v715 = vpop.f32.mrb[0].mxu0
        %v716 = vpop.f32.mrb[0].mxu0
        %v717 = vpop.f32.mrb[0].mxu0
        %718 = vdwg.mxu0
        %720 = vrot.lane.b32.xlu0 %v714, 120
        %v721 = vpop.permute.xlu0 %720
        %723 = vrot.lane.b32.xlu0 %v714, 112
        %v724 = vpop.permute.xlu0 %723
        %726 = vrot.lane.b32.xlu0 %v714, 104
        %v727 = vpop.permute.xlu0 %726
        %v729 = vcombine.low %v714, %v724
        %v730 = vcombine.high %v714, %v724
        %v732 = vunpack.c.l.s4 1983009808
        %v733 = vunpack.c.0.s8 %v732
        %v734 = vlaneseq
        %v735 = vshrl.u32 %v734, 7
        %v736 = vsub.s32 %v733, %v735
        %v737 = vrot.slane %v729, %v736
        %v739 = vunpack.c.l.s4 1983009808
        %v740 = vunpack.c.0.s8 %v739
        %v741 = vlaneseq
        %v742 = vshrl.u32 %v741, 7
        %v743 = vsub.s32 %v740, %v742
        %v744 = vrot.slane %v730, %v743
        %v745 = vcombine.low %v721, %v727
        %v746 = vcombine.high %v721, %v727
        %v748 = vunpack.c.l.s4 1983009808
        %v749 = vunpack.c.0.s8 %v748
        %v750 = vlaneseq
        %v751 = vshrl.u32 %v750, 7
        %v752 = vsub.s32 %v749, %v751
        %v753 = vrot.slane %v745, %v752
        %v755 = vunpack.c.l.s4 1983009808
        %v756 = vunpack.c.0.s8 %v755
        %v757 = vlaneseq
        %v758 = vshrl.u32 %v757, 7
        %v759 = vsub.s32 %v756, %v758
        %v760 = vrot.slane %v746, %v759
        %v761 = vcombine.low %v737, %v753
        %v762 = vcombine.high %v737, %v753
        %v764 = vunpack.c.l.s4 1934713408
        %v765 = vunpack.c.0.s8 %v764
        %v766 = vlaneseq
        %v767 = vshrl.u32 %v766, 7
        %v768 = vsub.s32 %v765, %v767
        %v769 = vrot.slane %v761, %v768
        %v771 = vunpack.c.l.s4 1934713408
        %v772 = vunpack.c.0.s8 %v771
        %v773 = vlaneseq
        %v774 = vshrl.u32 %v773, 7
        %v775 = vsub.s32 %v772, %v774
        %v776 = vrot.slane %v762, %v775
        %v777 = vcombine.low %v744, %v760
        %v778 = vcombine.high %v744, %v760
        %v780 = vunpack.c.l.s4 1934713408
        %v781 = vunpack.c.0.s8 %v780
        %v782 = vlaneseq
        %v783 = vshrl.u32 %v782, 7
        %v784 = vsub.s32 %v781, %v783
        %v785 = vrot.slane %v777, %v784
        %v787 = vunpack.c.l.s4 1934713408
        %v788 = vunpack.c.0.s8 %v787
        %v789 = vlaneseq
        %v790 = vshrl.u32 %v789, 7
        %v791 = vsub.s32 %v788, %v790
        %v792 = vrot.slane %v778, %v791
        %v793 = vcombine.high %v769, 0.0
        %v794 = vcombine.high %v776, 0.0
        %v795 = vcombine.high %v785, 0.0
        %v796 = vcombine.high %v792, 0.0
        %vm797 = vcmask 60416
        %798 = vst.msk [vmem:[%s211] sm:$0xf] %vm797, %v769
        %799 = vst.msk [vmem:[%s211 + $0x4] sm:$0xf] %vm797, %v793
        %800 = vst.msk [vmem:[%s211 + $0x8] sm:$0xf] %vm797, %v776
        %801 = vst.msk [vmem:[%s211 + $0xc] sm:$0xf] %vm797, %v794
        %802 = vst.msk [vmem:[%s211 + $0x10] sm:$0xf] %vm797, %v785
        %803 = vst.msk [vmem:[%s211 + $0x14] sm:$0xf] %vm797, %v795
        %804 = vst.msk [vmem:[%s211 + $0x18] sm:$0xf] %vm797, %v792
        %805 = vst.msk [vmem:[%s211 + $0x1c] sm:$0xf] %vm797, %v796
        %s806 = scalar_lea.vmem %s228, 8
        %v807 = vld [vmem:[%s806] sm:$0xf]
        %v808 = vld [vmem:[%s806 + $0x4] sm:$0xf]
        %v811 = vunpack.c.l.b16 %v807
        %v812 = vunpack.c.l.b16 %v808
        %v813 = vpack.c.b16 %v812, %v811
        %815 = vmatprep.subr.bf16.mxu0 0
        %816 = vmatpush1.bf16.msra.mxu0 %v813
        %817 = vmatprep.subr.bf16.mxu0 0
        %818 = vmatpush1.bf16.msra.mxu0 0
        %819 = vmatprep.subr.bf16.mxu0 0
        %820 = vmatpush1.bf16.msra.mxu0 0
        %821 = vmatprep.subr.bf16.mxu0 0
        %822 = vmatpush1.bf16.msra.mxu0 0
        %823 = vmatprep.subr.bf16.mxu0 0
        %824 = vmatpush1.bf16.msra.mxu0 0
        %825 = vmatprep.subr.bf16.mxu0 0
        %826 = vmatpush1.bf16.msra.mxu0 0
        %827 = vmatprep.subr.bf16.mxu0 0
        %828 = vmatpush1.bf16.msra.mxu0 0
        %829 = vmatprep.subr.bf16.mxu0 0
        %830 = vmatpush1.bf16.msra.mxu0 0
        %831 = vmatprep.subr.bf16.mxu0 0
        %832 = vmatpush1.bf16.msra.mxu0 0
        %833 = vmatprep.subr.bf16.mxu0 0
        %834 = vmatpush1.bf16.msra.mxu0 0
        %835 = vmatprep.subr.bf16.mxu0 0
        %836 = vmatpush1.bf16.msra.mxu0 0
        %837 = vmatprep.subr.bf16.mxu0 0
        %838 = vmatpush1.bf16.msra.mxu0 0
        %839 = vmatprep.subr.bf16.mxu0 0
        %840 = vmatpush1.bf16.msra.mxu0 0
        %841 = vmatprep.subr.bf16.mxu0 0
        %842 = vmatpush1.bf16.msra.mxu0 0
        %843 = vmatprep.subr.bf16.mxu0 0
        %844 = vmatpush1.bf16.msra.mxu0 0
        %845 = vmatprep.subr.bf16.mxu0 0
        %846 = vmatpush1.bf16.msra.mxu0 0
        %847 = vmatprep.mubr.bf16.mxu0 0
        %848 = vmatmul.mubr.bf16.gmra.mrb[0].mxu0 %v270
        %v849 = vpop.f32.mrb[0].mxu0
        %v850 = vadd.f32 0.0, %v849
        %v851 = vpop.f32.mrb[0].mxu0
        %v852 = vpop.f32.mrb[0].mxu0
        %v853 = vadd.f32 0.0, %v852
        %v854 = vpop.f32.mrb[0].mxu0
        %855 = vmatprep.mubr.bf16.mxu0 0
        %856 = vmatmul.mubr.bf16.gmra.mrb[0].mxu0 %v273
        %v857 = vpop.f32.mrb[0].mxu0
        %v858 = vadd.f32 0.0, %v857
        %v859 = vpop.f32.mrb[0].mxu0
        %v860 = vpop.f32.mrb[0].mxu0
        %v861 = vadd.f32 0.0, %v860
        %v862 = vpop.f32.mrb[0].mxu0
        %863 = vmatprep.mubr.bf16.mxu0 0
        %864 = vmatmul.mubr.bf16.gmra.mrb[0].mxu0 %v276
        %v865 = vpop.f32.mrb[0].mxu0
        %v866 = vadd.f32 0.0, %v865
        %v867 = vpop.f32.mrb[0].mxu0
        %v868 = vpop.f32.mrb[0].mxu0
        %v869 = vadd.f32 0.0, %v868
        %v870 = vpop.f32.mrb[0].mxu0
        %871 = vmatprep.mubr.bf16.mxu0 0
        %872 = vmatmul.mubr.bf16.gmra.mrb[0].mxu0 %v279
        %v873 = vpop.f32.mrb[0].mxu0
        %v874 = vadd.f32 0.0, %v873
        %v875 = vpop.f32.mrb[0].mxu0
        %v876 = vpop.f32.mrb[0].mxu0
        %v877 = vadd.f32 0.0, %v876
        %v878 = vpop.f32.mrb[0].mxu0
        %879 = vdwg.mxu0
        %v880 = vpack.c.bf16 %v853, %v850
        %v881 = vpack.c.bf16 %v861, %v858
        %v882 = vpack.c.bf16 %v869, %v866
        %v883 = vpack.c.bf16 %v877, %v874
        %s884 = scalar_lea.vmem %s221, 4
        %v885 = vld [vmem:[%s884] sm:$0xf]
        %v888 = vpack.i.b16 %v881, %v880
        %v890 = vshrl.u32 %v880, 16
        %v891 = vshrl.u32 %v881, 16
        %v892 = vpack.i.b16 %v891, %v890
        %v896 = vpack.i.b16 %v883, %v882
        %v898 = vshrl.u32 %v882, 16
        %v899 = vshrl.u32 %v883, 16
        %v900 = vpack.i.b16 %v899, %v898
        %v902 = vcombine.high %v888, %v368
        %v904 = vunpack.c.l.s4 1983009808
        %v905 = vunpack.c.0.s8 %v904
        %v906 = vlaneseq
        %v907 = vshrl.u32 %v906, 7
        %v908 = vsub.s32 %v905, %v907
        %v909 = vrot.slane %v888, %v908
        %v911 = vunpack.c.l.s4 1983009808
        %v912 = vunpack.c.0.s8 %v911
        %v913 = vlaneseq
        %v914 = vshrl.u32 %v913, 7
        %v915 = vsub.s32 %v912, %v914
        %v916 = vrot.slane %v902, %v915
        %v917 = vcombine.high %v896, %v368
        %v919 = vunpack.c.l.s4 1983009808
        %v920 = vunpack.c.0.s8 %v919
        %v921 = vlaneseq
        %v922 = vshrl.u32 %v921, 7
        %v923 = vsub.s32 %v920, %v922
        %v924 = vrot.slane %v896, %v923
        %v926 = vunpack.c.l.s4 1983009808
        %v927 = vunpack.c.0.s8 %v926
        %v928 = vlaneseq
        %v929 = vshrl.u32 %v928, 7
        %v930 = vsub.s32 %v927, %v929
        %v931 = vrot.slane %v917, %v930
        %v932 = vcombine.low %v909, %v924
        %v933 = vcombine.high %v909, %v924
        %v935 = vunpack.c.l.s4 1934713408
        %v936 = vunpack.c.0.s8 %v935
        %v937 = vlaneseq
        %v938 = vshrl.u32 %v937, 7
        %v939 = vsub.s32 %v936, %v938
        %v940 = vrot.slane %v932, %v939
        %v942 = vunpack.c.l.s4 1934713408
        %v943 = vunpack.c.0.s8 %v942
        %v944 = vlaneseq
        %v945 = vshrl.u32 %v944, 7
        %v946 = vsub.s32 %v943, %v945
        %v947 = vrot.slane %v933, %v946
        %v948 = vcombine.low %v916, %v931
        %v949 = vcombine.high %v916, %v931
        %v951 = vunpack.c.l.s4 1934713408
        %v952 = vunpack.c.0.s8 %v951
        %v953 = vlaneseq
        %v954 = vshrl.u32 %v953, 7
        %v955 = vsub.s32 %v952, %v954
        %v956 = vrot.slane %v948, %v955
        %v958 = vunpack.c.l.s4 1934713408
        %v959 = vunpack.c.0.s8 %v958
        %v960 = vlaneseq
        %v961 = vshrl.u32 %v960, 7
        %v962 = vsub.s32 %v959, %v961
        %v963 = vrot.slane %v949, %v962
        %v964 = vcombine.high %v940, 0
        %v965 = vcombine.high %v947, 0
        %v966 = vcombine.high %v956, 0
        %v967 = vcombine.high %v963, 0
        %v968 = vcombine.high %v892, %v371
        %v970 = vunpack.c.l.s4 1983009808
        %v971 = vunpack.c.0.s8 %v970
        %v972 = vlaneseq
        %v973 = vshrl.u32 %v972, 7
        %v974 = vsub.s32 %v971, %v973
        %v975 = vrot.slane %v892, %v974
        %v977 = vunpack.c.l.s4 1983009808
        %v978 = vunpack.c.0.s8 %v977
        %v979 = vlaneseq
        %v980 = vshrl.u32 %v979, 7
        %v981 = vsub.s32 %v978, %v980
        %v982 = vrot.slane %v968, %v981
        %v983 = vcombine.high %v900, %v371
        %v985 = vunpack.c.l.s4 1983009808
        %v986 = vunpack.c.0.s8 %v985
        %v987 = vlaneseq
        %v988 = vshrl.u32 %v987, 7
        %v989 = vsub.s32 %v986, %v988
        %v990 = vrot.slane %v900, %v989
        %v992 = vunpack.c.l.s4 1983009808
        %v993 = vunpack.c.0.s8 %v992
        %v994 = vlaneseq
        %v995 = vshrl.u32 %v994, 7
        %v996 = vsub.s32 %v993, %v995
        %v997 = vrot.slane %v983, %v996
        %v998 = vcombine.low %v975, %v990
        %v999 = vcombine.high %v975, %v990
        %v1001 = vunpack.c.l.s4 1934713408
        %v1002 = vunpack.c.0.s8 %v1001
        %v1003 = vlaneseq
        %v1004 = vshrl.u32 %v1003, 7
        %v1005 = vsub.s32 %v1002, %v1004
        %v1006 = vrot.slane %v998, %v1005
        %v1008 = vunpack.c.l.s4 1934713408
        %v1009 = vunpack.c.0.s8 %v1008
        %v1010 = vlaneseq
        %v1011 = vshrl.u32 %v1010, 7
        %v1012 = vsub.s32 %v1009, %v1011
        %v1013 = vrot.slane %v999, %v1012
        %v1014 = vcombine.low %v982, %v997
        %v1015 = vcombine.high %v982, %v997
        %v1017 = vunpack.c.l.s4 1934713408
        %v1018 = vunpack.c.0.s8 %v1017
        %v1019 = vlaneseq
        %v1020 = vshrl.u32 %v1019, 7
        %v1021 = vsub.s32 %v1018, %v1020
        %v1022 = vrot.slane %v1014, %v1021
        %v1024 = vunpack.c.l.s4 1934713408
        %v1025 = vunpack.c.0.s8 %v1024
        %v1026 = vlaneseq
        %v1027 = vshrl.u32 %v1026, 7
        %v1028 = vsub.s32 %v1025, %v1027
        %v1029 = vrot.slane %v1015, %v1028
        %v1030 = vcombine.high %v1006, 0
        %v1031 = vcombine.high %v1013, 0
        %v1032 = vcombine.high %v1022, 0
        %v1033 = vcombine.high %v1029, 0
        %v1034 = vcombine.low %v940, %v947
        %v1036 = vunpack.c.l.s4 1983009808
        %v1037 = vunpack.c.0.s8 %v1036
        %v1038 = vlaneseq
        %v1039 = vshrl.u32 %v1038, 7
        %v1040 = vsub.s32 %v1037, %v1039
        %v1041 = vrot.slane %v1034, %v1040
        %v1042 = vcombine.low %v964, %v965
        %v1044 = vunpack.c.l.s4 1983009808
        %v1045 = vunpack.c.0.s8 %v1044
        %v1046 = vlaneseq
        %v1047 = vshrl.u32 %v1046, 7
        %v1048 = vsub.s32 %v1045, %v1047
        %v1049 = vrot.slane %v1042, %v1048
        %v1050 = vcombine.low %v956, %v963
        %v1052 = vunpack.c.l.s4 1983009808
        %v1053 = vunpack.c.0.s8 %v1052
        %v1054 = vlaneseq
        %v1055 = vshrl.u32 %v1054, 7
        %v1056 = vsub.s32 %v1053, %v1055
        %v1057 = vrot.slane %v1050, %v1056
        %v1058 = vcombine.low %v966, %v967
        %v1060 = vunpack.c.l.s4 1983009808
        %v1061 = vunpack.c.0.s8 %v1060
        %v1062 = vlaneseq
        %v1063 = vshrl.u32 %v1062, 7
        %v1064 = vsub.s32 %v1061, %v1063
        %v1065 = vrot.slane %v1058, %v1064
        %v1066 = vcombine.low %v1041, %v1049
        %v1068 = vunpack.c.l.s4 1934713408
        %v1069 = vunpack.c.0.s8 %v1068
        %v1070 = vlaneseq
        %v1071 = vshrl.u32 %v1070, 7
        %v1072 = vsub.s32 %v1069, %v1071
        %v1073 = vrot.slane %v1066, %v1072
        %v1074 = vcombine.low %v1057, %v1065
        %v1076 = vunpack.c.l.s4 1934713408
        %v1077 = vunpack.c.0.s8 %v1076
        %v1078 = vlaneseq
        %v1079 = vshrl.u32 %v1078, 7
        %v1080 = vsub.s32 %v1077, %v1079
        %v1081 = vrot.slane %v1074, %v1080
        %v1082 = vcombine.low %v1073, %v1081
        %v1083 = vcombine.high %v1073, %v1081
        %v1084 = vcombine.low %v1006, %v1013
        %v1086 = vunpack.c.l.s4 1983009808
        %v1087 = vunpack.c.0.s8 %v1086
        %v1088 = vlaneseq
        %v1089 = vshrl.u32 %v1088, 7
        %v1090 = vsub.s32 %v1087, %v1089
        %v1091 = vrot.slane %v1084, %v1090
        %v1092 = vcombine.low %v1030, %v1031
        %v1094 = vunpack.c.l.s4 1983009808
        %v1095 = vunpack.c.0.s8 %v1094
        %v1096 = vlaneseq
        %v1097 = vshrl.u32 %v1096, 7
        %v1098 = vsub.s32 %v1095, %v1097
        %v1099 = vrot.slane %v1092, %v1098
        %v1100 = vcombine.low %v1022, %v1029
        %v1102 = vunpack.c.l.s4 1983009808
        %v1103 = vunpack.c.0.s8 %v1102
        %v1104 = vlaneseq
        %v1105 = vshrl.u32 %v1104, 7
        %v1106 = vsub.s32 %v1103, %v1105
        %v1107 = vrot.slane %v1100, %v1106
        %v1108 = vcombine.low %v1032, %v1033
        %v1110 = vunpack.c.l.s4 1983009808
        %v1111 = vunpack.c.0.s8 %v1110
        %v1112 = vlaneseq
        %v1113 = vshrl.u32 %v1112, 7
        %v1114 = vsub.s32 %v1111, %v1113
        %v1115 = vrot.slane %v1108, %v1114
        %v1116 = vcombine.low %v1091, %v1099
        %v1118 = vunpack.c.l.s4 1934713408
        %v1119 = vunpack.c.0.s8 %v1118
        %v1120 = vlaneseq
        %v1121 = vshrl.u32 %v1120, 7
        %v1122 = vsub.s32 %v1119, %v1121
        %v1123 = vrot.slane %v1116, %v1122
        %v1124 = vcombine.low %v1107, %v1115
        %v1126 = vunpack.c.l.s4 1934713408
        %v1127 = vunpack.c.0.s8 %v1126
        %v1128 = vlaneseq
        %v1129 = vshrl.u32 %v1128, 7
        %v1130 = vsub.s32 %v1127, %v1129
        %v1131 = vrot.slane %v1124, %v1130
        %v1132 = vcombine.low %v1123, %v1131
        %v1133 = vcombine.high %v1123, %v1131
        %v1136 = vpack.i.b16 %v1132, %v1082
        %v1137 = vshrl.u32 %v1082, 16
        %v1138 = vshrl.u32 %v1132, 16
        %v1139 = vpack.i.b16 %v1138, %v1137
        %v1142 = vpack.i.b16 %v1133, %v1083
        %v1143 = vshrl.u32 %v1083, 16
        %v1144 = vshrl.u32 %v1133, 16
        %v1145 = vpack.i.b16 %v1144, %v1143
        %1146 = vrot.lane.b32.xlu0 %v1139, 8
        %v1147 = vpop.permute.xlu0 %1146
        %1148 = vrot.lane.b32.xlu0 %v1142, 16
        %v1149 = vpop.permute.xlu0 %1148
        %1150 = vrot.lane.b32.xlu0 %v1145, 24
        %v1151 = vpop.permute.xlu0 %1150
        %v1154 = vsel %vm623, %v1136, %v1147
        %v1156 = vsel %vm268, %v1154, %v1149
        %v1158 = vsel %vm629, %v1156, %v1151
        %v1161 = vsel %vm268, %v885, 0
        %1163 = vmatprep.subr.bf16.mxu0 0
        %1164 = vmatpush1.bf16.msra.mxu0 %v1158
        %1165 = vmatprep.subr.bf16.mxu0 0
        %1166 = vmatpush1.bf16.msra.mxu0 0
        %1167 = vmatprep.subr.bf16.mxu0 0
        %1168 = vmatpush1.bf16.msra.mxu0 0
        %1169 = vmatprep.subr.bf16.mxu0 0
        %1170 = vmatpush1.bf16.msra.mxu0 0
        %1171 = vmatprep.subr.bf16.mxu0 0
        %1172 = vmatpush1.bf16.msra.mxu0 0
        %1173 = vmatprep.subr.bf16.mxu0 0
        %1174 = vmatpush1.bf16.msra.mxu0 0
        %1175 = vmatprep.subr.bf16.mxu0 0
        %1176 = vmatpush1.bf16.msra.mxu0 0
        %1177 = vmatprep.subr.bf16.mxu0 0
        %1178 = vmatpush1.bf16.msra.mxu0 0
        %1179 = vmatprep.subr.bf16.mxu0 0
        %1180 = vmatpush1.bf16.msra.mxu0 0
        %1181 = vmatprep.subr.bf16.mxu0 0
        %1182 = vmatpush1.bf16.msra.mxu0 0
        %1183 = vmatprep.subr.bf16.mxu0 0
        %1184 = vmatpush1.bf16.msra.mxu0 0
        %1185 = vmatprep.subr.bf16.mxu0 0
        %1186 = vmatpush1.bf16.msra.mxu0 0
        %1187 = vmatprep.subr.bf16.mxu0 0
        %1188 = vmatpush1.bf16.msra.mxu0 0
        %1189 = vmatprep.subr.bf16.mxu0 0
        %1190 = vmatpush1.bf16.msra.mxu0 0
        %1191 = vmatprep.subr.bf16.mxu0 0
        %1192 = vmatpush1.bf16.msra.mxu0 0
        %1193 = vmatprep.subr.bf16.mxu0 0
        %1194 = vmatpush1.bf16.msra.mxu0 0
        %1195 = vmatprep.mubr.bf16.mxu0 0
        %1196 = vmatmul.mubr.bf16.gmra.mrb[0].mxu0 %v1161
        %v1197 = vpop.f32.mrb[0].mxu0
        %v1198 = vadd.f32 %v675, %v1197
        %v1199 = vpop.f32.mrb[0].mxu0
        %v1200 = vpop.f32.mrb[0].mxu0
        %v1201 = vpop.f32.mrb[0].mxu0
        %1202 = vdwg.mxu0
        %1204 = vrot.lane.b32.xlu0 %v1198, 120
        %v1205 = vpop.permute.xlu0 %1204
        %1207 = vrot.lane.b32.xlu0 %v1198, 112
        %v1208 = vpop.permute.xlu0 %1207
        %1210 = vrot.lane.b32.xlu0 %v1198, 104
        %v1211 = vpop.permute.xlu0 %1210
        %v1213 = vcombine.low %v1198, %v1208
        %v1214 = vcombine.high %v1198, %v1208
        %v1216 = vunpack.c.l.s4 1983009808
        %v1217 = vunpack.c.0.s8 %v1216
        %v1218 = vlaneseq
        %v1219 = vshrl.u32 %v1218, 7
        %v1220 = vsub.s32 %v1217, %v1219
        %v1221 = vrot.slane %v1213, %v1220
        %v1223 = vunpack.c.l.s4 1983009808
        %v1224 = vunpack.c.0.s8 %v1223
        %v1225 = vlaneseq
        %v1226 = vshrl.u32 %v1225, 7
        %v1227 = vsub.s32 %v1224, %v1226
        %v1228 = vrot.slane %v1214, %v1227
        %v1229 = vcombine.low %v1205, %v1211
        %v1230 = vcombine.high %v1205, %v1211
        %v1232 = vunpack.c.l.s4 1983009808
        %v1233 = vunpack.c.0.s8 %v1232
        %v1234 = vlaneseq
        %v1235 = vshrl.u32 %v1234, 7
        %v1236 = vsub.s32 %v1233, %v1235
        %v1237 = vrot.slane %v1229, %v1236
        %v1239 = vunpack.c.l.s4 1983009808
        %v1240 = vunpack.c.0.s8 %v1239
        %v1241 = vlaneseq
        %v1242 = vshrl.u32 %v1241, 7
        %v1243 = vsub.s32 %v1240, %v1242
        %v1244 = vrot.slane %v1230, %v1243
        %v1245 = vcombine.low %v1221, %v1237
        %v1246 = vcombine.high %v1221, %v1237
        %v1248 = vunpack.c.l.s4 1934713408
        %v1249 = vunpack.c.0.s8 %v1248
        %v1250 = vlaneseq
        %v1251 = vshrl.u32 %v1250, 7
        %v1252 = vsub.s32 %v1249, %v1251
        %v1253 = vrot.slane %v1245, %v1252
        %v1255 = vunpack.c.l.s4 1934713408
        %v1256 = vunpack.c.0.s8 %v1255
        %v1257 = vlaneseq
        %v1258 = vshrl.u32 %v1257, 7
        %v1259 = vsub.s32 %v1256, %v1258
        %v1260 = vrot.slane %v1246, %v1259
        %v1261 = vcombine.low %v1228, %v1244
        %v1262 = vcombine.high %v1228, %v1244
        %v1264 = vunpack.c.l.s4 1934713408
        %v1265 = vunpack.c.0.s8 %v1264
        %v1266 = vlaneseq
        %v1267 = vshrl.u32 %v1266, 7
        %v1268 = vsub.s32 %v1265, %v1267
        %v1269 = vrot.slane %v1261, %v1268
        %v1271 = vunpack.c.l.s4 1934713408
        %v1272 = vunpack.c.0.s8 %v1271
        %v1273 = vlaneseq
        %v1274 = vshrl.u32 %v1273, 7
        %v1275 = vsub.s32 %v1272, %v1274
        %v1276 = vrot.slane %v1262, %v1275
        %v1277 = vcombine.high %v1253, 0.0
        %v1278 = vcombine.high %v1260, 0.0
        %v1279 = vcombine.high %v1269, 0.0
        %v1280 = vcombine.high %v1276, 0.0
        %s1281 = scalar_lea.vmem %s211, 32 [#allocation2]
        %1282 = vst.msk [vmem:[%s1281] sm:$0xf] %vm797, %v1253
        %1283 = vst.msk [vmem:[%s1281 + $0x4] sm:$0xf] %vm797, %v1277
        %1284 = vst.msk [vmem:[%s1281 + $0x8] sm:$0xf] %vm797, %v1260
        %1285 = vst.msk [vmem:[%s1281 + $0xc] sm:$0xf] %vm797, %v1278
        %1286 = vst.msk [vmem:[%s1281 + $0x10] sm:$0xf] %vm797, %v1269
        %1287 = vst.msk [vmem:[%s1281 + $0x14] sm:$0xf] %vm797, %v1279
        %1288 = vst.msk [vmem:[%s1281 + $0x18] sm:$0xf] %vm797, %v1276
        %1289 = vst.msk [vmem:[%s1281 + $0x1c] sm:$0xf] %vm797, %v1280
        %s1290 = scalar_lea.vmem %s228, 16
        %v1291 = vld [vmem:[%s1290] sm:$0xf]
        %v1292 = vld [vmem:[%s1290 + $0x4] sm:$0xf]
        %v1295 = vunpack.c.l.b16 %v1291
        %v1296 = vunpack.c.l.b16 %v1292
        %v1297 = vpack.c.b16 %v1296, %v1295
        %1299 = vmatprep.subr.bf16.mxu0 0
        %1300 = vmatpush1.bf16.msra.mxu0 %v1297
        %1301 = vmatprep.subr.bf16.mxu0 0
        %1302 = vmatpush1.bf16.msra.mxu0 0
        %1303 = vmatprep.subr.bf16.mxu0 0
        %1304 = vmatpush1.bf16.msra.mxu0 0
        %1305 = vmatprep.subr.bf16.mxu0 0
        %1306 = vmatpush1.bf16.msra.mxu0 0
        %1307 = vmatprep.subr.bf16.mxu0 0
        %1308 = vmatpush1.bf16.msra.mxu0 0
        %1309 = vmatprep.subr.bf16.mxu0 0
        %1310 = vmatpush1.bf16.msra.mxu0 0
        %1311 = vmatprep.subr.bf16.mxu0 0
        %1312 = vmatpush1.bf16.msra.mxu0 0
        %1313 = vmatprep.subr.bf16.mxu0 0
        %1314 = vmatpush1.bf16.msra.mxu0 0
        %1315 = vmatprep.subr.bf16.mxu0 0
        %1316 = vmatpush1.bf16.msra.mxu0 0
        %1317 = vmatprep.subr.bf16.mxu0 0
        %1318 = vmatpush1.bf16.msra.mxu0 0
        %1319 = vmatprep.subr.bf16.mxu0 0
        %1320 = vmatpush1.bf16.msra.mxu0 0
        %1321 = vmatprep.subr.bf16.mxu0 0
        %1322 = vmatpush1.bf16.msra.mxu0 0
        %1323 = vmatprep.subr.bf16.mxu0 0
        %1324 = vmatpush1.bf16.msra.mxu0 0
        %1325 = vmatprep.subr.bf16.mxu0 0
        %1326 = vmatpush1.bf16.msra.mxu0 0
        %1327 = vmatprep.subr.bf16.mxu0 0
        %1328 = vmatpush1.bf16.msra.mxu0 0
        %1329 = vmatprep.subr.bf16.mxu0 0
        %1330 = vmatpush1.bf16.msra.mxu0 0
        %1331 = vmatprep.mubr.bf16.mxu0 0
        %1332 = vmatmul.mubr.bf16.gmra.mrb[0].mxu0 %v270
        %v1333 = vpop.f32.mrb[0].mxu0
        %v1334 = vadd.f32 0.0, %v1333
        %v1335 = vpop.f32.mrb[0].mxu0
        %v1336 = vpop.f32.mrb[0].mxu0
        %v1337 = vadd.f32 0.0, %v1336
        %v1338 = vpop.f32.mrb[0].mxu0
        %1339 = vmatprep.mubr.bf16.mxu0 0
        %1340 = vmatmul.mubr.bf16.gmra.mrb[0].mxu0 %v273
        %v1341 = vpop.f32.mrb[0].mxu0
        %v1342 = vadd.f32 0.0, %v1341
        %v1343 = vpop.f32.mrb[0].mxu0
        %v1344 = vpop.f32.mrb[0].mxu0
        %v1345 = vadd.f32 0.0, %v1344
        %v1346 = vpop.f32.mrb[0].mxu0
        %1347 = vmatprep.mubr.bf16.mxu0 0
        %1348 = vmatmul.mubr.bf16.gmra.mrb[0].mxu0 %v276
        %v1349 = vpop.f32.mrb[0].mxu0
        %v1350 = vadd.f32 0.0, %v1349
        %v1351 = vpop.f32.mrb[0].mxu0
        %v1352 = vpop.f32.mrb[0].mxu0
        %v1353 = vadd.f32 0.0, %v1352
        %v1354 = vpop.f32.mrb[0].mxu0
        %1355 = vmatprep.mubr.bf16.mxu0 0
        %1356 = vmatmul.mubr.bf16.gmra.mrb[0].mxu0 %v279
        %v1357 = vpop.f32.mrb[0].mxu0
        %v1358 = vadd.f32 0.0, %v1357
        %v1359 = vpop.f32.mrb[0].mxu0
        %v1360 = vpop.f32.mrb[0].mxu0
        %v1361 = vadd.f32 0.0, %v1360
        %v1362 = vpop.f32.mrb[0].mxu0
        %1363 = vdwg.mxu0
        %v1364 = vpack.c.bf16 %v1337, %v1334
        %v1365 = vpack.c.bf16 %v1345, %v1342
        %v1366 = vpack.c.bf16 %v1353, %v1350
        %v1367 = vpack.c.bf16 %v1361, %v1358
        %s1368 = scalar_lea.vmem %s221, 8
        %v1369 = vld [vmem:[%s1368] sm:$0xf]
        %v1372 = vpack.i.b16 %v1365, %v1364
        %v1374 = vshrl.u32 %v1364, 16
        %v1375 = vshrl.u32 %v1365, 16
        %v1376 = vpack.i.b16 %v1375, %v1374
        %v1380 = vpack.i.b16 %v1367, %v1366
        %v1382 = vshrl.u32 %v1366, 16
        %v1383 = vshrl.u32 %v1367, 16
        %v1384 = vpack.i.b16 %v1383, %v1382
        %v1386 = vcombine.high %v1372, %v368
        %v1388 = vunpack.c.l.s4 1983009808
        %v1389 = vunpack.c.0.s8 %v1388
        %v1390 = vlaneseq
        %v1391 = vshrl.u32 %v1390, 7
        %v1392 = vsub.s32 %v1389, %v1391
        %v1393 = vrot.slane %v1372, %v1392
        %v1395 = vunpack.c.l.s4 1983009808
        %v1396 = vunpack.c.0.s8 %v1395
        %v1397 = vlaneseq
        %v1398 = vshrl.u32 %v1397, 7
        %v1399 = vsub.s32 %v1396, %v1398
        %v1400 = vrot.slane %v1386, %v1399
        %v1401 = vcombine.high %v1380, %v368
        %v1403 = vunpack.c.l.s4 1983009808
        %v1404 = vunpack.c.0.s8 %v1403
        %v1405 = vlaneseq
        %v1406 = vshrl.u32 %v1405, 7
        %v1407 = vsub.s32 %v1404, %v1406
        %v1408 = vrot.slane %v1380, %v1407
        %v1410 = vunpack.c.l.s4 1983009808
        %v1411 = vunpack.c.0.s8 %v1410
        %v1412 = vlaneseq
        %v1413 = vshrl.u32 %v1412, 7
        %v1414 = vsub.s32 %v1411, %v1413
        %v1415 = vrot.slane %v1401, %v1414
        %v1416 = vcombine.low %v1393, %v1408
        %v1417 = vcombine.high %v1393, %v1408
        %v1419 = vunpack.c.l.s4 1934713408
        %v1420 = vunpack.c.0.s8 %v1419
        %v1421 = vlaneseq
        %v1422 = vshrl.u32 %v1421, 7
        %v1423 = vsub.s32 %v1420, %v1422
        %v1424 = vrot.slane %v1416, %v1423
        %v1426 = vunpack.c.l.s4 1934713408
        %v1427 = vunpack.c.0.s8 %v1426
        %v1428 = vlaneseq
        %v1429 = vshrl.u32 %v1428, 7
        %v1430 = vsub.s32 %v1427, %v1429
        %v1431 = vrot.slane %v1417, %v1430
        %v1432 = vcombine.low %v1400, %v1415
        %v1433 = vcombine.high %v1400, %v1415
        %v1435 = vunpack.c.l.s4 1934713408
        %v1436 = vunpack.c.0.s8 %v1435
        %v1437 = vlaneseq
        %v1438 = vshrl.u32 %v1437, 7
        %v1439 = vsub.s32 %v1436, %v1438
        %v1440 = vrot.slane %v1432, %v1439
        %v1442 = vunpack.c.l.s4 1934713408
        %v1443 = vunpack.c.0.s8 %v1442
        %v1444 = vlaneseq
        %v1445 = vshrl.u32 %v1444, 7
        %v1446 = vsub.s32 %v1443, %v1445
        %v1447 = vrot.slane %v1433, %v1446
        %v1448 = vcombine.high %v1424, 0
        %v1449 = vcombine.high %v1431, 0
        %v1450 = vcombine.high %v1440, 0
        %v1451 = vcombine.high %v1447, 0
        %v1452 = vcombine.high %v1376, %v371
        %v1454 = vunpack.c.l.s4 1983009808
        %v1455 = vunpack.c.0.s8 %v1454
        %v1456 = vlaneseq
        %v1457 = vshrl.u32 %v1456, 7
        %v1458 = vsub.s32 %v1455, %v1457
        %v1459 = vrot.slane %v1376, %v1458
        %v1461 = vunpack.c.l.s4 1983009808
        %v1462 = vunpack.c.0.s8 %v1461
        %v1463 = vlaneseq
        %v1464 = vshrl.u32 %v1463, 7
        %v1465 = vsub.s32 %v1462, %v1464
        %v1466 = vrot.slane %v1452, %v1465
        %v1467 = vcombine.high %v1384, %v371
        %v1469 = vunpack.c.l.s4 1983009808
        %v1470 = vunpack.c.0.s8 %v1469
        %v1471 = vlaneseq
        %v1472 = vshrl.u32 %v1471, 7
        %v1473 = vsub.s32 %v1470, %v1472
        %v1474 = vrot.slane %v1384, %v1473
        %v1476 = vunpack.c.l.s4 1983009808
        %v1477 = vunpack.c.0.s8 %v1476
        %v1478 = vlaneseq
        %v1479 = vshrl.u32 %v1478, 7
        %v1480 = vsub.s32 %v1477, %v1479
        %v1481 = vrot.slane %v1467, %v1480
        %v1482 = vcombine.low %v1459, %v1474
        %v1483 = vcombine.high %v1459, %v1474
        %v1485 = vunpack.c.l.s4 1934713408
        %v1486 = vunpack.c.0.s8 %v1485
        %v1487 = vlaneseq
        %v1488 = vshrl.u32 %v1487, 7
        %v1489 = vsub.s32 %v1486, %v1488
        %v1490 = vrot.slane %v1482, %v1489
        %v1492 = vunpack.c.l.s4 1934713408
        %v1493 = vunpack.c.0.s8 %v1492
        %v1494 = vlaneseq
        %v1495 = vshrl.u32 %v1494, 7
        %v1496 = vsub.s32 %v1493, %v1495
        %v1497 = vrot.slane %v1483, %v1496
        %v1498 = vcombine.low %v1466, %v1481
        %v1499 = vcombine.high %v1466, %v1481
        %v1501 = vunpack.c.l.s4 1934713408
        %v1502 = vunpack.c.0.s8 %v1501
        %v1503 = vlaneseq
        %v1504 = vshrl.u32 %v1503, 7
        %v1505 = vsub.s32 %v1502, %v1504
        %v1506 = vrot.slane %v1498, %v1505
        %v1508 = vunpack.c.l.s4 1934713408
        %v1509 = vunpack.c.0.s8 %v1508
        %v1510 = vlaneseq
        %v1511 = vshrl.u32 %v1510, 7
        %v1512 = vsub.s32 %v1509, %v1511
        %v1513 = vrot.slane %v1499, %v1512
        %v1514 = vcombine.high %v1490, 0
        %v1515 = vcombine.high %v1497, 0
        %v1516 = vcombine.high %v1506, 0
        %v1517 = vcombine.high %v1513, 0
        %v1518 = vcombine.low %v1424, %v1431
        %v1520 = vunpack.c.l.s4 1983009808
        %v1521 = vunpack.c.0.s8 %v1520
        %v1522 = vlaneseq
        %v1523 = vshrl.u32 %v1522, 7
        %v1524 = vsub.s32 %v1521, %v1523
        %v1525 = vrot.slane %v1518, %v1524
        %v1526 = vcombine.low %v1448, %v1449
        %v1528 = vunpack.c.l.s4 1983009808
        %v1529 = vunpack.c.0.s8 %v1528
        %v1530 = vlaneseq
        %v1531 = vshrl.u32 %v1530, 7
        %v1532 = vsub.s32 %v1529, %v1531
        %v1533 = vrot.slane %v1526, %v1532
        %v1534 = vcombine.low %v1440, %v1447
        %v1536 = vunpack.c.l.s4 1983009808
        %v1537 = vunpack.c.0.s8 %v1536
        %v1538 = vlaneseq
        %v1539 = vshrl.u32 %v1538, 7
        %v1540 = vsub.s32 %v1537, %v1539
        %v1541 = vrot.slane %v1534, %v1540
        %v1542 = vcombine.low %v1450, %v1451
        %v1544 = vunpack.c.l.s4 1983009808
        %v1545 = vunpack.c.0.s8 %v1544
        %v1546 = vlaneseq
        %v1547 = vshrl.u32 %v1546, 7
        %v1548 = vsub.s32 %v1545, %v1547
        %v1549 = vrot.slane %v1542, %v1548
        %v1550 = vcombine.low %v1525, %v1533
        %v1552 = vunpack.c.l.s4 1934713408
        %v1553 = vunpack.c.0.s8 %v1552
        %v1554 = vlaneseq
        %v1555 = vshrl.u32 %v1554, 7
        %v1556 = vsub.s32 %v1553, %v1555
        %v1557 = vrot.slane %v1550, %v1556
        %v1558 = vcombine.low %v1541, %v1549
        %v1560 = vunpack.c.l.s4 1934713408
        %v1561 = vunpack.c.0.s8 %v1560
        %v1562 = vlaneseq
        %v1563 = vshrl.u32 %v1562, 7
        %v1564 = vsub.s32 %v1561, %v1563
        %v1565 = vrot.slane %v1558, %v1564
        %v1566 = vcombine.low %v1557, %v1565
        %v1567 = vcombine.high %v1557, %v1565
        %v1568 = vcombine.low %v1490, %v1497
        %v1570 = vunpack.c.l.s4 1983009808
        %v1571 = vunpack.c.0.s8 %v1570
        %v1572 = vlaneseq
        %v1573 = vshrl.u32 %v1572, 7
        %v1574 = vsub.s32 %v1571, %v1573
        %v1575 = vrot.slane %v1568, %v1574
        %v1576 = vcombine.low %v1514, %v1515
        %v1578 = vunpack.c.l.s4 1983009808
        %v1579 = vunpack.c.0.s8 %v1578
        %v1580 = vlaneseq
        %v1581 = vshrl.u32 %v1580, 7
        %v1582 = vsub.s32 %v1579, %v1581
        %v1583 = vrot.slane %v1576, %v1582
        %v1584 = vcombine.low %v1506, %v1513
        %v1586 = vunpack.c.l.s4 1983009808
        %v1587 = vunpack.c.0.s8 %v1586
        %v1588 = vlaneseq
        %v1589 = vshrl.u32 %v1588, 7
        %v1590 = vsub.s32 %v1587, %v1589
        %v1591 = vrot.slane %v1584, %v1590
        %v1592 = vcombine.low %v1516, %v1517
        %v1594 = vunpack.c.l.s4 1983009808
        %v1595 = vunpack.c.0.s8 %v1594
        %v1596 = vlaneseq
        %v1597 = vshrl.u32 %v1596, 7
        %v1598 = vsub.s32 %v1595, %v1597
        %v1599 = vrot.slane %v1592, %v1598
        %v1600 = vcombine.low %v1575, %v1583
        %v1602 = vunpack.c.l.s4 1934713408
        %v1603 = vunpack.c.0.s8 %v1602
        %v1604 = vlaneseq
        %v1605 = vshrl.u32 %v1604, 7
        %v1606 = vsub.s32 %v1603, %v1605
        %v1607 = vrot.slane %v1600, %v1606
        %v1608 = vcombine.low %v1591, %v1599
        %v1610 = vunpack.c.l.s4 1934713408
        %v1611 = vunpack.c.0.s8 %v1610
        %v1612 = vlaneseq
        %v1613 = vshrl.u32 %v1612, 7
        %v1614 = vsub.s32 %v1611, %v1613
        %v1615 = vrot.slane %v1608, %v1614
        %v1616 = vcombine.low %v1607, %v1615
        %v1617 = vcombine.high %v1607, %v1615
        %v1620 = vpack.i.b16 %v1616, %v1566
        %v1621 = vshrl.u32 %v1566, 16
        %v1622 = vshrl.u32 %v1616, 16
        %v1623 = vpack.i.b16 %v1622, %v1621
        %v1626 = vpack.i.b16 %v1617, %v1567
        %v1627 = vshrl.u32 %v1567, 16
        %v1628 = vshrl.u32 %v1617, 16
        %v1629 = vpack.i.b16 %v1628, %v1627
        %1630 = vrot.lane.b32.xlu0 %v1623, 8
        %v1631 = vpop.permute.xlu0 %1630
        %1632 = vrot.lane.b32.xlu0 %v1626, 16
        %v1633 = vpop.permute.xlu0 %1632
        %1634 = vrot.lane.b32.xlu0 %v1629, 24
        %v1635 = vpop.permute.xlu0 %1634
        %v1638 = vsel %vm623, %v1620, %v1631
        %v1640 = vsel %vm268, %v1638, %v1633
        %v1642 = vsel %vm629, %v1640, %v1635
        %v1645 = vsel %vm268, %v1369, 0
        %1647 = vmatprep.subr.bf16.mxu0 0
        %1648 = vmatpush1.bf16.msra.mxu0 %v1642
        %1649 = vmatprep.subr.bf16.mxu0 0
        %1650 = vmatpush1.bf16.msra.mxu0 0
        %1651 = vmatprep.subr.bf16.mxu0 0
        %1652 = vmatpush1.bf16.msra.mxu0 0
        %1653 = vmatprep.subr.bf16.mxu0 0
        %1654 = vmatpush1.bf16.msra.mxu0 0
        %1655 = vmatprep.subr.bf16.mxu0 0
        %1656 = vmatpush1.bf16.msra.mxu0 0
        %1657 = vmatprep.subr.bf16.mxu0 0
        %1658 = vmatpush1.bf16.msra.mxu0 0
        %1659 = vmatprep.subr.bf16.mxu0 0
        %1660 = vmatpush1.bf16.msra.mxu0 0
        %1661 = vmatprep.subr.bf16.mxu0 0
        %1662 = vmatpush1.bf16.msra.mxu0 0
        %1663 = vmatprep.subr.bf16.mxu0 0
        %1664 = vmatpush1.bf16.msra.mxu0 0
        %1665 = vmatprep.subr.bf16.mxu0 0
        %1666 = vmatpush1.bf16.msra.mxu0 0
        %1667 = vmatprep.subr.bf16.mxu0 0
        %1668 = vmatpush1.bf16.msra.mxu0 0
        %1669 = vmatprep.subr.bf16.mxu0 0
        %1670 = vmatpush1.bf16.msra.mxu0 0
        %1671 = vmatprep.subr.bf16.mxu0 0
        %1672 = vmatpush1.bf16.msra.mxu0 0
        %1673 = vmatprep.subr.bf16.mxu0 0
        %1674 = vmatpush1.bf16.msra.mxu0 0
        %1675 = vmatprep.subr.bf16.mxu0 0
        %1676 = vmatpush1.bf16.msra.mxu0 0
        %1677 = vmatprep.subr.bf16.mxu0 0
        %1678 = vmatpush1.bf16.msra.mxu0 0
        %1679 = vmatprep.mubr.bf16.mxu0 0
        %1680 = vmatmul.mubr.bf16.gmra.mrb[0].mxu0 %v1645
        %v1681 = vpop.f32.mrb[0].mxu0
        %v1682 = vadd.f32 %v675, %v1681
        %v1683 = vpop.f32.mrb[0].mxu0
        %v1684 = vpop.f32.mrb[0].mxu0
        %v1685 = vpop.f32.mrb[0].mxu0
        %1686 = vdwg.mxu0
        %1688 = vrot.lane.b32.xlu0 %v1682, 120
        %v1689 = vpop.permute.xlu0 %1688
        %1691 = vrot.lane.b32.xlu0 %v1682, 112
        %v1692 = vpop.permute.xlu0 %1691
        %1694 = vrot.lane.b32.xlu0 %v1682, 104
        %v1695 = vpop.permute.xlu0 %1694
        %v1697 = vcombine.low %v1682, %v1692
        %v1698 = vcombine.high %v1682, %v1692
        %v1700 = vunpack.c.l.s4 1983009808
        %v1701 = vunpack.c.0.s8 %v1700
        %v1702 = vlaneseq
        %v1703 = vshrl.u32 %v1702, 7
        %v1704 = vsub.s32 %v1701, %v1703
        %v1705 = vrot.slane %v1697, %v1704
        %v1707 = vunpack.c.l.s4 1983009808
        %v1708 = vunpack.c.0.s8 %v1707
        %v1709 = vlaneseq
        %v1710 = vshrl.u32 %v1709, 7
        %v1711 = vsub.s32 %v1708, %v1710
        %v1712 = vrot.slane %v1698, %v1711
        %v1713 = vcombine.low %v1689, %v1695
        %v1714 = vcombine.high %v1689, %v1695
        %v1716 = vunpack.c.l.s4 1983009808
        %v1717 = vunpack.c.0.s8 %v1716
        %v1718 = vlaneseq
        %v1719 = vshrl.u32 %v1718, 7
        %v1720 = vsub.s32 %v1717, %v1719
        %v1721 = vrot.slane %v1713, %v1720
        %v1723 = vunpack.c.l.s4 1983009808
        %v1724 = vunpack.c.0.s8 %v1723
        %v1725 = vlaneseq
        %v1726 = vshrl.u32 %v1725, 7
        %v1727 = vsub.s32 %v1724, %v1726
        %v1728 = vrot.slane %v1714, %v1727
        %v1729 = vcombine.low %v1705, %v1721
        %v1730 = vcombine.high %v1705, %v1721
        %v1732 = vunpack.c.l.s4 1934713408
        %v1733 = vunpack.c.0.s8 %v1732
        %v1734 = vlaneseq
        %v1735 = vshrl.u32 %v1734, 7
        %v1736 = vsub.s32 %v1733, %v1735
        %v1737 = vrot.slane %v1729, %v1736
        %v1739 = vunpack.c.l.s4 1934713408
        %v1740 = vunpack.c.0.s8 %v1739
        %v1741 = vlaneseq
        %v1742 = vshrl.u32 %v1741, 7
        %v1743 = vsub.s32 %v1740, %v1742
        %v1744 = vrot.slane %v1730, %v1743
        %v1745 = vcombine.low %v1712, %v1728
        %v1746 = vcombine.high %v1712, %v1728
        %v1748 = vunpack.c.l.s4 1934713408
        %v1749 = vunpack.c.0.s8 %v1748
        %v1750 = vlaneseq
        %v1751 = vshrl.u32 %v1750, 7
        %v1752 = vsub.s32 %v1749, %v1751
        %v1753 = vrot.slane %v1745, %v1752
        %v1755 = vunpack.c.l.s4 1934713408
        %v1756 = vunpack.c.0.s8 %v1755
        %v1757 = vlaneseq
        %v1758 = vshrl.u32 %v1757, 7
        %v1759 = vsub.s32 %v1756, %v1758
        %v1760 = vrot.slane %v1746, %v1759
        %v1761 = vcombine.high %v1737, 0.0
        %v1762 = vcombine.high %v1744, 0.0
        %v1763 = vcombine.high %v1753, 0.0
        %v1764 = vcombine.high %v1760, 0.0
        %s1765 = scalar_lea.vmem %s211, 64 [#allocation2]
        %1766 = vst.msk [vmem:[%s1765] sm:$0xf] %vm797, %v1737
        %1767 = vst.msk [vmem:[%s1765 + $0x4] sm:$0xf] %vm797, %v1761
        %1768 = vst.msk [vmem:[%s1765 + $0x8] sm:$0xf] %vm797, %v1744
        %1769 = vst.msk [vmem:[%s1765 + $0xc] sm:$0xf] %vm797, %v1762
        %1770 = vst.msk [vmem:[%s1765 + $0x10] sm:$0xf] %vm797, %v1753
        %1771 = vst.msk [vmem:[%s1765 + $0x14] sm:$0xf] %vm797, %v1763
        %1772 = vst.msk [vmem:[%s1765 + $0x18] sm:$0xf] %vm797, %v1760
        %1773 = vst.msk [vmem:[%s1765 + $0x1c] sm:$0xf] %vm797, %v1764
        %s1774 = scalar_lea.vmem %s228, 24
        %v1775 = vld [vmem:[%s1774] sm:$0xf]
        %v1776 = vld [vmem:[%s1774 + $0x4] sm:$0xf]
        %v1779 = vunpack.c.l.b16 %v1775
        %v1780 = vunpack.c.l.b16 %v1776
        %v1781 = vpack.c.b16 %v1780, %v1779
        %1783 = vmatprep.subr.bf16.mxu0 0
        %1784 = vmatpush1.bf16.msra.mxu0 %v1781
        %1785 = vmatprep.subr.bf16.mxu0 0
        %1786 = vmatpush1.bf16.msra.mxu0 0
        %1787 = vmatprep.subr.bf16.mxu0 0
        %1788 = vmatpush1.bf16.msra.mxu0 0
        %1789 = vmatprep.subr.bf16.mxu0 0
        %1790 = vmatpush1.bf16.msra.mxu0 0
        %1791 = vmatprep.subr.bf16.mxu0 0
        %1792 = vmatpush1.bf16.msra.mxu0 0
        %1793 = vmatprep.subr.bf16.mxu0 0
        %1794 = vmatpush1.bf16.msra.mxu0 0
        %1795 = vmatprep.subr.bf16.mxu0 0
        %1796 = vmatpush1.bf16.msra.mxu0 0
        %1797 = vmatprep.subr.bf16.mxu0 0
        %1798 = vmatpush1.bf16.msra.mxu0 0
        %1799 = vmatprep.subr.bf16.mxu0 0
        %1800 = vmatpush1.bf16.msra.mxu0 0
        %1801 = vmatprep.subr.bf16.mxu0 0
        %1802 = vmatpush1.bf16.msra.mxu0 0
        %1803 = vmatprep.subr.bf16.mxu0 0
        %1804 = vmatpush1.bf16.msra.mxu0 0
        %1805 = vmatprep.subr.bf16.mxu0 0
        %1806 = vmatpush1.bf16.msra.mxu0 0
        %1807 = vmatprep.subr.bf16.mxu0 0
        %1808 = vmatpush1.bf16.msra.mxu0 0
        %1809 = vmatprep.subr.bf16.mxu0 0
        %1810 = vmatpush1.bf16.msra.mxu0 0
        %1811 = vmatprep.subr.bf16.mxu0 0
        %1812 = vmatpush1.bf16.msra.mxu0 0
        %1813 = vmatprep.subr.bf16.mxu0 0
        %1814 = vmatpush1.bf16.msra.mxu0 0
        %1815 = vmatprep.mubr.bf16.mxu0 0
        %1816 = vmatmul.mubr.bf16.gmra.mrb[0].mxu0 %v270
        %v1817 = vpop.f32.mrb[0].mxu0
        %v1818 = vadd.f32 0.0, %v1817
        %v1819 = vpop.f32.mrb[0].mxu0
        %v1820 = vpop.f32.mrb[0].mxu0
        %v1821 = vadd.f32 0.0, %v1820
        %v1822 = vpop.f32.mrb[0].mxu0
        %1823 = vmatprep.mubr.bf16.mxu0 0
        %1824 = vmatmul.mubr.bf16.gmra.mrb[0].mxu0 %v273
        %v1825 = vpop.f32.mrb[0].mxu0
        %v1826 = vadd.f32 0.0, %v1825
        %v1827 = vpop.f32.mrb[0].mxu0
        %v1828 = vpop.f32.mrb[0].mxu0
        %v1829 = vadd.f32 0.0, %v1828
        %v1830 = vpop.f32.mrb[0].mxu0
        %1831 = vmatprep.mubr.bf16.mxu0 0
        %1832 = vmatmul.mubr.bf16.gmra.mrb[0].mxu0 %v276
        %v1833 = vpop.f32.mrb[0].mxu0
        %v1834 = vadd.f32 0.0, %v1833
        %v1835 = vpop.f32.mrb[0].mxu0
        %v1836 = vpop.f32.mrb[0].mxu0
        %v1837 = vadd.f32 0.0, %v1836
        %v1838 = vpop.f32.mrb[0].mxu0
        %1839 = vmatprep.mubr.bf16.mxu0 0
        %1840 = vmatmul.mubr.bf16.gmra.mrb[0].mxu0 %v279
        %v1841 = vpop.f32.mrb[0].mxu0
        %v1842 = vadd.f32 0.0, %v1841
        %v1843 = vpop.f32.mrb[0].mxu0
        %v1844 = vpop.f32.mrb[0].mxu0
        %v1845 = vadd.f32 0.0, %v1844
        %v1846 = vpop.f32.mrb[0].mxu0
        %1847 = vdwg.mxu0
        %v1848 = vpack.c.bf16 %v1821, %v1818
        %v1849 = vpack.c.bf16 %v1829, %v1826
        %v1850 = vpack.c.bf16 %v1837, %v1834
        %v1851 = vpack.c.bf16 %v1845, %v1842
        %s1852 = scalar_lea.vmem %s221, 12
        %v1853 = vld [vmem:[%s1852] sm:$0xf]
        %v1856 = vpack.i.b16 %v1849, %v1848
        %v1858 = vshrl.u32 %v1848, 16
        %v1859 = vshrl.u32 %v1849, 16
        %v1860 = vpack.i.b16 %v1859, %v1858
        %v1864 = vpack.i.b16 %v1851, %v1850
        %v1866 = vshrl.u32 %v1850, 16
        %v1867 = vshrl.u32 %v1851, 16
        %v1868 = vpack.i.b16 %v1867, %v1866
        %v1870 = vcombine.high %v1856, %v368
        %v1872 = vunpack.c.l.s4 1983009808
        %v1873 = vunpack.c.0.s8 %v1872
        %v1874 = vlaneseq
        %v1875 = vshrl.u32 %v1874, 7
        %v1876 = vsub.s32 %v1873, %v1875
        %v1877 = vrot.slane %v1856, %v1876
        %v1879 = vunpack.c.l.s4 1983009808
        %v1880 = vunpack.c.0.s8 %v1879
        %v1881 = vlaneseq
        %v1882 = vshrl.u32 %v1881, 7
        %v1883 = vsub.s32 %v1880, %v1882
        %v1884 = vrot.slane %v1870, %v1883
        %v1885 = vcombine.high %v1864, %v368
        %v1887 = vunpack.c.l.s4 1983009808
        %v1888 = vunpack.c.0.s8 %v1887
        %v1889 = vlaneseq
        %v1890 = vshrl.u32 %v1889, 7
        %v1891 = vsub.s32 %v1888, %v1890
        %v1892 = vrot.slane %v1864, %v1891
        %v1894 = vunpack.c.l.s4 1983009808
        %v1895 = vunpack.c.0.s8 %v1894
        %v1896 = vlaneseq
        %v1897 = vshrl.u32 %v1896, 7
        %v1898 = vsub.s32 %v1895, %v1897
        %v1899 = vrot.slane %v1885, %v1898
        %v1900 = vcombine.low %v1877, %v1892
        %v1901 = vcombine.high %v1877, %v1892
        %v1903 = vunpack.c.l.s4 1934713408
        %v1904 = vunpack.c.0.s8 %v1903
        %v1905 = vlaneseq
        %v1906 = vshrl.u32 %v1905, 7
        %v1907 = vsub.s32 %v1904, %v1906
        %v1908 = vrot.slane %v1900, %v1907
        %v1910 = vunpack.c.l.s4 1934713408
        %v1911 = vunpack.c.0.s8 %v1910
        %v1912 = vlaneseq
        %v1913 = vshrl.u32 %v1912, 7
        %v1914 = vsub.s32 %v1911, %v1913
        %v1915 = vrot.slane %v1901, %v1914
        %v1916 = vcombine.low %v1884, %v1899
        %v1917 = vcombine.high %v1884, %v1899
        %v1919 = vunpack.c.l.s4 1934713408
        %v1920 = vunpack.c.0.s8 %v1919
        %v1921 = vlaneseq
        %v1922 = vshrl.u32 %v1921, 7
        %v1923 = vsub.s32 %v1920, %v1922
        %v1924 = vrot.slane %v1916, %v1923
        %v1926 = vunpack.c.l.s4 1934713408
        %v1927 = vunpack.c.0.s8 %v1926
        %v1928 = vlaneseq
        %v1929 = vshrl.u32 %v1928, 7
        %v1930 = vsub.s32 %v1927, %v1929
        %v1931 = vrot.slane %v1917, %v1930
        %v1932 = vcombine.high %v1908, 0
        %v1933 = vcombine.high %v1915, 0
        %v1934 = vcombine.high %v1924, 0
        %v1935 = vcombine.high %v1931, 0
        %v1936 = vcombine.high %v1860, %v371
        %v1938 = vunpack.c.l.s4 1983009808
        %v1939 = vunpack.c.0.s8 %v1938
        %v1940 = vlaneseq
        %v1941 = vshrl.u32 %v1940, 7
        %v1942 = vsub.s32 %v1939, %v1941
        %v1943 = vrot.slane %v1860, %v1942
        %v1945 = vunpack.c.l.s4 1983009808
        %v1946 = vunpack.c.0.s8 %v1945
        %v1947 = vlaneseq
        %v1948 = vshrl.u32 %v1947, 7
        %v1949 = vsub.s32 %v1946, %v1948
        %v1950 = vrot.slane %v1936, %v1949
        %v1951 = vcombine.high %v1868, %v371
        %v1953 = vunpack.c.l.s4 1983009808
        %v1954 = vunpack.c.0.s8 %v1953
        %v1955 = vlaneseq
        %v1956 = vshrl.u32 %v1955, 7
        %v1957 = vsub.s32 %v1954, %v1956
        %v1958 = vrot.slane %v1868, %v1957
        %v1960 = vunpack.c.l.s4 1983009808
        %v1961 = vunpack.c.0.s8 %v1960
        %v1962 = vlaneseq
        %v1963 = vshrl.u32 %v1962, 7
        %v1964 = vsub.s32 %v1961, %v1963
        %v1965 = vrot.slane %v1951, %v1964
        %v1966 = vcombine.low %v1943, %v1958
        %v1967 = vcombine.high %v1943, %v1958
        %v1969 = vunpack.c.l.s4 1934713408
        %v1970 = vunpack.c.0.s8 %v1969
        %v1971 = vlaneseq
        %v1972 = vshrl.u32 %v1971, 7
        %v1973 = vsub.s32 %v1970, %v1972
        %v1974 = vrot.slane %v1966, %v1973
        %v1976 = vunpack.c.l.s4 1934713408
        %v1977 = vunpack.c.0.s8 %v1976
        %v1978 = vlaneseq
        %v1979 = vshrl.u32 %v1978, 7
        %v1980 = vsub.s32 %v1977, %v1979
        %v1981 = vrot.slane %v1967, %v1980
        %v1982 = vcombine.low %v1950, %v1965
        %v1983 = vcombine.high %v1950, %v1965
        %v1985 = vunpack.c.l.s4 1934713408
        %v1986 = vunpack.c.0.s8 %v1985
        %v1987 = vlaneseq
        %v1988 = vshrl.u32 %v1987, 7
        %v1989 = vsub.s32 %v1986, %v1988
        %v1990 = vrot.slane %v1982, %v1989
        %v1992 = vunpack.c.l.s4 1934713408
        %v1993 = vunpack.c.0.s8 %v1992
        %v1994 = vlaneseq
        %v1995 = vshrl.u32 %v1994, 7
        %v1996 = vsub.s32 %v1993, %v1995
        %v1997 = vrot.slane %v1983, %v1996
        %v1998 = vcombine.high %v1974, 0
        %v1999 = vcombine.high %v1981, 0
        %v2000 = vcombine.high %v1990, 0
        %v2001 = vcombine.high %v1997, 0
        %v2002 = vcombine.low %v1908, %v1915
        %v2004 = vunpack.c.l.s4 1983009808
        %v2005 = vunpack.c.0.s8 %v2004
        %v2006 = vlaneseq
        %v2007 = vshrl.u32 %v2006, 7
        %v2008 = vsub.s32 %v2005, %v2007
        %v2009 = vrot.slane %v2002, %v2008
        %v2010 = vcombine.low %v1932, %v1933
        %v2012 = vunpack.c.l.s4 1983009808
        %v2013 = vunpack.c.0.s8 %v2012
        %v2014 = vlaneseq
        %v2015 = vshrl.u32 %v2014, 7
        %v2016 = vsub.s32 %v2013, %v2015
        %v2017 = vrot.slane %v2010, %v2016
        %v2018 = vcombine.low %v1924, %v1931
        %v2020 = vunpack.c.l.s4 1983009808
        %v2021 = vunpack.c.0.s8 %v2020
        %v2022 = vlaneseq
        %v2023 = vshrl.u32 %v2022, 7
        %v2024 = vsub.s32 %v2021, %v2023
        %v2025 = vrot.slane %v2018, %v2024
        %v2026 = vcombine.low %v1934, %v1935
        %v2028 = vunpack.c.l.s4 1983009808
        %v2029 = vunpack.c.0.s8 %v2028
        %v2030 = vlaneseq
        %v2031 = vshrl.u32 %v2030, 7
        %v2032 = vsub.s32 %v2029, %v2031
        %v2033 = vrot.slane %v2026, %v2032
        %v2034 = vcombine.low %v2009, %v2017
        %v2036 = vunpack.c.l.s4 1934713408
        %v2037 = vunpack.c.0.s8 %v2036
        %v2038 = vlaneseq
        %v2039 = vshrl.u32 %v2038, 7
        %v2040 = vsub.s32 %v2037, %v2039
        %v2041 = vrot.slane %v2034, %v2040
        %v2042 = vcombine.low %v2025, %v2033
        %v2044 = vunpack.c.l.s4 1934713408
        %v2045 = vunpack.c.0.s8 %v2044
        %v2046 = vlaneseq
        %v2047 = vshrl.u32 %v2046, 7
        %v2048 = vsub.s32 %v2045, %v2047
        %v2049 = vrot.slane %v2042, %v2048
        %v2050 = vcombine.low %v2041, %v2049
        %v2051 = vcombine.high %v2041, %v2049
        %v2052 = vcombine.low %v1974, %v1981
        %v2054 = vunpack.c.l.s4 1983009808
        %v2055 = vunpack.c.0.s8 %v2054
        %v2056 = vlaneseq
        %v2057 = vshrl.u32 %v2056, 7
        %v2058 = vsub.s32 %v2055, %v2057
        %v2059 = vrot.slane %v2052, %v2058
        %v2060 = vcombine.low %v1998, %v1999
        %v2062 = vunpack.c.l.s4 1983009808
        %v2063 = vunpack.c.0.s8 %v2062
        %v2064 = vlaneseq
        %v2065 = vshrl.u32 %v2064, 7
        %v2066 = vsub.s32 %v2063, %v2065
        %v2067 = vrot.slane %v2060, %v2066
        %v2068 = vcombine.low %v1990, %v1997
        %v2070 = vunpack.c.l.s4 1983009808
        %v2071 = vunpack.c.0.s8 %v2070
        %v2072 = vlaneseq
        %v2073 = vshrl.u32 %v2072, 7
        %v2074 = vsub.s32 %v2071, %v2073
        %v2075 = vrot.slane %v2068, %v2074
        %v2076 = vcombine.low %v2000, %v2001
        %v2078 = vunpack.c.l.s4 1983009808
        %v2079 = vunpack.c.0.s8 %v2078
        %v2080 = vlaneseq
        %v2081 = vshrl.u32 %v2080, 7
        %v2082 = vsub.s32 %v2079, %v2081
        %v2083 = vrot.slane %v2076, %v2082
        %v2084 = vcombine.low %v2059, %v2067
        %v2086 = vunpack.c.l.s4 1934713408
        %v2087 = vunpack.c.0.s8 %v2086
        %v2088 = vlaneseq
        %v2089 = vshrl.u32 %v2088, 7
        %v2090 = vsub.s32 %v2087, %v2089
        %v2091 = vrot.slane %v2084, %v2090
        %v2092 = vcombine.low %v2075, %v2083
        %v2094 = vunpack.c.l.s4 1934713408
        %v2095 = vunpack.c.0.s8 %v2094
        %v2096 = vlaneseq
        %v2097 = vshrl.u32 %v2096, 7
        %v2098 = vsub.s32 %v2095, %v2097
        %v2099 = vrot.slane %v2092, %v2098
        %v2100 = vcombine.low %v2091, %v2099
        %v2101 = vcombine.high %v2091, %v2099
        %v2104 = vpack.i.b16 %v2100, %v2050
        %v2105 = vshrl.u32 %v2050, 16
        %v2106 = vshrl.u32 %v2100, 16
        %v2107 = vpack.i.b16 %v2106, %v2105
        %v2110 = vpack.i.b16 %v2101, %v2051
        %v2111 = vshrl.u32 %v2051, 16
        %v2112 = vshrl.u32 %v2101, 16
        %v2113 = vpack.i.b16 %v2112, %v2111
        %2114 = vrot.lane.b32.xlu0 %v2107, 8
        %v2115 = vpop.permute.xlu0 %2114
        %2116 = vrot.lane.b32.xlu0 %v2110, 16
        %v2117 = vpop.permute.xlu0 %2116
        %2118 = vrot.lane.b32.xlu0 %v2113, 24
        %v2119 = vpop.permute.xlu0 %2118
        %v2122 = vsel %vm623, %v2104, %v2115
        %v2124 = vsel %vm268, %v2122, %v2117
        %v2126 = vsel %vm629, %v2124, %v2119
        %v2129 = vsel %vm268, %v1853, 0
        %2131 = vmatprep.subr.bf16.mxu0 0
        %2132 = vmatpush1.bf16.msra.mxu0 %v2126
        %2133 = vmatprep.subr.bf16.mxu0 0
        %2134 = vmatpush1.bf16.msra.mxu0 0
        %2135 = vmatprep.subr.bf16.mxu0 0
        %2136 = vmatpush1.bf16.msra.mxu0 0
        %2137 = vmatprep.subr.bf16.mxu0 0
        %2138 = vmatpush1.bf16.msra.mxu0 0
        %2139 = vmatprep.subr.bf16.mxu0 0
        %2140 = vmatpush1.bf16.msra.mxu0 0
        %2141 = vmatprep.subr.bf16.mxu0 0
        %2142 = vmatpush1.bf16.msra.mxu0 0
        %2143 = vmatprep.subr.bf16.mxu0 0
        %2144 = vmatpush1.bf16.msra.mxu0 0
        %2145 = vmatprep.subr.bf16.mxu0 0
        %2146 = vmatpush1.bf16.msra.mxu0 0
        %2147 = vmatprep.subr.bf16.mxu0 0
        %2148 = vmatpush1.bf16.msra.mxu0 0
        %2149 = vmatprep.subr.bf16.mxu0 0
        %2150 = vmatpush1.bf16.msra.mxu0 0
        %2151 = vmatprep.subr.bf16.mxu0 0
        %2152 = vmatpush1.bf16.msra.mxu0 0
        %2153 = vmatprep.subr.bf16.mxu0 0
        %2154 = vmatpush1.bf16.msra.mxu0 0
        %2155 = vmatprep.subr.bf16.mxu0 0
        %2156 = vmatpush1.bf16.msra.mxu0 0
        %2157 = vmatprep.subr.bf16.mxu0 0
        %2158 = vmatpush1.bf16.msra.mxu0 0
        %2159 = vmatprep.subr.bf16.mxu0 0
        %2160 = vmatpush1.bf16.msra.mxu0 0
        %2161 = vmatprep.subr.bf16.mxu0 0
        %2162 = vmatpush1.bf16.msra.mxu0 0
        %2163 = vmatprep.mubr.bf16.mxu0 0
        %2164 = vmatmul.mubr.bf16.gmra.mrb[0].mxu0 %v2129
        %v2165 = vpop.f32.mrb[0].mxu0
        %v2166 = vadd.f32 %v675, %v2165
        %v2167 = vpop.f32.mrb[0].mxu0
        %v2168 = vpop.f32.mrb[0].mxu0
        %v2169 = vpop.f32.mrb[0].mxu0
        %2170 = vdwg.mxu0
        %2172 = vrot.lane.b32.xlu0 %v2166, 120
        %v2173 = vpop.permute.xlu0 %2172
        %2175 = vrot.lane.b32.xlu0 %v2166, 112
        %v2176 = vpop.permute.xlu0 %2175
        %2178 = vrot.lane.b32.xlu0 %v2166, 104
        %v2179 = vpop.permute.xlu0 %2178
        %v2181 = vcombine.low %v2166, %v2176
        %v2182 = vcombine.high %v2166, %v2176
        %v2184 = vunpack.c.l.s4 1983009808
        %v2185 = vunpack.c.0.s8 %v2184
        %v2186 = vlaneseq
        %v2187 = vshrl.u32 %v2186, 7
        %v2188 = vsub.s32 %v2185, %v2187
        %v2189 = vrot.slane %v2181, %v2188
        %v2191 = vunpack.c.l.s4 1983009808
        %v2192 = vunpack.c.0.s8 %v2191
        %v2193 = vlaneseq
        %v2194 = vshrl.u32 %v2193, 7
        %v2195 = vsub.s32 %v2192, %v2194
        %v2196 = vrot.slane %v2182, %v2195
        %v2197 = vcombine.low %v2173, %v2179
        %v2198 = vcombine.high %v2173, %v2179
        %v2200 = vunpack.c.l.s4 1983009808
        %v2201 = vunpack.c.0.s8 %v2200
        %v2202 = vlaneseq
        %v2203 = vshrl.u32 %v2202, 7
        %v2204 = vsub.s32 %v2201, %v2203
        %v2205 = vrot.slane %v2197, %v2204
        %v2207 = vunpack.c.l.s4 1983009808
        %v2208 = vunpack.c.0.s8 %v2207
        %v2209 = vlaneseq
        %v2210 = vshrl.u32 %v2209, 7
        %v2211 = vsub.s32 %v2208, %v2210
        %v2212 = vrot.slane %v2198, %v2211
        %v2213 = vcombine.low %v2189, %v2205
        %v2214 = vcombine.high %v2189, %v2205
        %v2216 = vunpack.c.l.s4 1934713408
        %v2217 = vunpack.c.0.s8 %v2216
        %v2218 = vlaneseq
        %v2219 = vshrl.u32 %v2218, 7
        %v2220 = vsub.s32 %v2217, %v2219
        %v2221 = vrot.slane %v2213, %v2220
        %v2223 = vunpack.c.l.s4 1934713408
        %v2224 = vunpack.c.0.s8 %v2223
        %v2225 = vlaneseq
        %v2226 = vshrl.u32 %v2225, 7
        %v2227 = vsub.s32 %v2224, %v2226
        %v2228 = vrot.slane %v2214, %v2227
        %v2229 = vcombine.low %v2196, %v2212
        %v2230 = vcombine.high %v2196, %v2212
        %v2232 = vunpack.c.l.s4 1934713408
        %v2233 = vunpack.c.0.s8 %v2232
        %v2234 = vlaneseq
        %v2235 = vshrl.u32 %v2234, 7
        %v2236 = vsub.s32 %v2233, %v2235
        %v2237 = vrot.slane %v2229, %v2236
        %v2239 = vunpack.c.l.s4 1934713408
        %v2240 = vunpack.c.0.s8 %v2239
        %v2241 = vlaneseq
        %v2242 = vshrl.u32 %v2241, 7
        %v2243 = vsub.s32 %v2240, %v2242
        %v2244 = vrot.slane %v2230, %v2243
        %v2245 = vcombine.high %v2221, 0.0
        %v2246 = vcombine.high %v2228, 0.0
        %v2247 = vcombine.high %v2237, 0.0
        %v2248 = vcombine.high %v2244, 0.0
        %s2249 = scalar_lea.vmem %s211, 96 [#allocation2]
        %2250 = vst.msk [vmem:[%s2249] sm:$0xf] %vm797, %v2221
        %2251 = vst.msk [vmem:[%s2249 + $0x4] sm:$0xf] %vm797, %v2245
        %2252 = vst.msk [vmem:[%s2249 + $0x8] sm:$0xf] %vm797, %v2228
        %2253 = vst.msk [vmem:[%s2249 + $0xc] sm:$0xf] %vm797, %v2246
        %2254 = vst.msk [vmem:[%s2249 + $0x10] sm:$0xf] %vm797, %v2237
        %2255 = vst.msk [vmem:[%s2249 + $0x14] sm:$0xf] %vm797, %v2247
        %2256 = vst.msk [vmem:[%s2249 + $0x18] sm:$0xf] %vm797, %v2244
        %2257 = vst.msk [vmem:[%s2249 + $0x1c] sm:$0xf] %vm797, %v2248
        %s2258 = sand.u32 %s117, 1
        %s2259 = scalar_lea.sflag [#allocation3], %s2258
        %s2260 = sand.u32 %s117, 1
        %s2261 = smul.addr %s2260, 128
        %s2262 = scalar_lea.vmem [#allocation2], %s2261
        // Predicated region
        $region33: #{tpu_custom_call.1} parent=31 // pred_check
          %p2263 = pneg %p127
        $region34: #{tpu_custom_call.1} parent=31 // pred_check_branch
          %2265 = sbr.rel (%p2263) target = $region36
        $region35: #{tpu_custom_call.1} parent=31 // pred_region
          #allocation5 [shape = 'u32[6]{0}', space=smem, size = 0x18, scoped, tag = 'DMA stride descriptor']
          %s2266 = smul.u32 4, %s22
          %s2268 = ssub.s32 2048, 2048
          %2269 = vsyncadd %s2259, %s2268
          %s2270 = smul.addr %s21, 8
          %s2271 = smul.addr %s2266, 16
          %s2272 = sadd.s32 %s2270, %s2271
          %s2273 = smul.addr %s2272, 64
          %s2274 = scalar_lea.hbm %s3, %s2273
          %s2276 = sshll.u32 1, 14
          %s2277 = sxor.u32 4294967295, %s2276
          %s2280 = sshll.u32 7, 18
          %s2281 = sxor.u32 4294967295, %s2280
          %s2282 = sand.u32 0, %s2281
          %s2284 = sor.u32 %s2282, 0
          %s2286 = sshll.u32 3, 24
          %s2287 = sxor.u32 4294967295, %s2286
          %s2288 = sand.u32 %s2284, %s2287
          %s2290 = sor.u32 %s2288, 0
          %s2291 = sshll.u32 %s2262, 4
          %s2292 = int_to_ptr.vmem [resolvable:$true] %s2291
          %2298 = sst [smem:[#allocation5]] 512
          %s2299 = scalar_lea.smem [#allocation5], 1
          %2300 = sst [smem:[%s2299]] 1024
          %s2301 = scalar_lea.smem [#allocation5], 2
          %2302 = sst [smem:[%s2301]] 8
          %s2303 = scalar_lea.smem [#allocation5], 3
          %2304 = sst [smem:[%s2303]] 64
          %s2305 = scalar_lea.smem [#allocation5], 4
          %2306 = sst [smem:[%s2305]] 64
          %s2307 = scalar_lea.smem [#allocation5], 5
          %2308 = sst [smem:[%s2307]] 4
          %2310 = dma.general %s2292, 2048, %s2274, %s2259, [#allocation4], [#allocation5], %s2290, 0
        $region36: #{tpu_custom_call.1} parent=31 // pred_fallthru
          _
      $region32: #{tpu_custom_call.1} parent=5 // pred_fallthru
        _
      %p2311 = scmp.le.s32.totalorder 2, %s12
      // Predicated region
      $region37: #{tpu_custom_call.1} parent=5 // pred_check
        %p2312 = pneg %p2311
      $region38: #{tpu_custom_call.1} parent=5 // pred_check_branch
        %2314 = sbr.rel (%p2312) target = $region40
      $region39: #{tpu_custom_call.1} parent=5 // pred_region
        %s2315 = ssub.s32 %s12, 2
        // Predicated region
        $region41: #{tpu_custom_call.1} parent=39 // pred_check
          %p2316 = pneg %p133
        $region42: #{tpu_custom_call.1} parent=39 // pred_check_branch
          %2318 = sbr.rel (%p2316) target = $region44
        $region43: #{tpu_custom_call.1} parent=39 // pred_region
          %s2319 = sand.u32 %s118, 1
          %s2320 = scalar_lea.sflag [#allocation3], %s2319
          %s2321 = sand.u32 %s118, 1
          %s2322 = smul.addr %s2321, 128
          %s2323 = scalar_lea.vmem [#allocation2], %s2322
          %2324 = dma.done %s2320, 2048
        $region44: #{tpu_custom_call.1} parent=39 // pred_fallthru
          _
      $region40: #{tpu_custom_call.1} parent=5 // pred_fallthru
        _
    $region6: #{tpu_custom_call.1} parent=1 // loop_footer
      %s16 = sadd.s32 1, %s12
    $region7: #{tpu_custom_call.1} parent=1 // loop_footer_branch
      %11 = sbr.rel target = $region3
    $region8: #{tpu_custom_call.1} parent=1 // loop_exit
      _
    %2325 = vsyncpa [#allocation3], 1
    %s2326 = scalar_lea.sflag [#allocation3], 1
    %2327 = vsyncpa %s2326, 1

</llo_original>
